<compile_context>
chip_gen: v6e
topology: v6e:2x2x1
jax: 0.10.0
libtpu: 0.0.40
codegen_flags: <defaults>
</compile_context>

<pallas_src>
import numpy as np
import jax
import jax.numpy as jnp
from jax import lax
from jax.experimental import pallas as pl
from jax.experimental.pallas import tpu as pltpu

L = 40             # sequence length (fc1 expects 64*40)
C = 64             # conv out channels
K = 3              # conv kernel size
H = 64             # fc1 out features
O = 2              # fc2 out features
HP = 128           # fc1 width padded to a full lane group
OUT_PAD = 128      # lane-dense padded output width
KA_PAD = 48        # 42 padded-input cols + 1 ones col (folded conv bias) + 5 zero cols
BIAS_COL = L + 2   # column of ones that picks up the folded conv bias row
CHUNK = 256        # conv->fc1 contraction chunk (keeps live slab <= 256 KB even at TB=256)
NCHUNK = (L * C) // CHUNK


def cnn1d_kernel(xa_ref, wconv_ref, w1_ref, b1_ref, w2_ref, b2_ref, out_ref):
    xa = xa_ref[...]                                   # (TB, 48)
    tb = xa.shape[0]

    def body(j, acc):
        off = pl.multiple_of(j * CHUNK, CHUNK)
        # conv (+folded bias) for a 256-wide slab of (t, c) outputs, then ReLU
        a = jnp.dot(xa, wconv_ref[:, pl.ds(off, CHUNK)],
                    preferred_element_type=jnp.float32)
        a = jnp.maximum(a, 0.0)
        # partial fc1 contribution of this slab
        return acc + jnp.dot(a, w1_ref[pl.ds(off, CHUNK), :],
                             preferred_element_type=jnp.float32)

    h = lax.fori_loop(0, NCHUNK, body,
                      jnp.zeros((tb, HP), jnp.float32), unroll=True)
    h = jnp.maximum(h + b1_ref[...], 0.0)              # fc1 bias + ReLU
    out = jnp.dot(h, w2_ref[...], preferred_element_type=jnp.float32) + b2_ref[...]
    out_ref[...] = out.astype(out_ref.dtype)


def prepare_params(params):
    """One-time host-side weight preparation (off the per-call path)."""
    wc, bc, w1, b1, w2, b2 = (np.asarray(p, np.float32) for p in params)

    # conv as a banded (Toeplitz) matmul weight; columns ordered t*C + c, bias folded in.
    w_kT = wc[:, 0, :].T                               # (K, C): w_kT[k, c] = wc[c, 0, k]
    p_idx = np.arange(L + 2)[:, None]                  # padded-input position p
    t_idx = np.arange(L)[None, :]                      # conv output position t
    kk = p_idx - t_idx                                 # (42, 40) tap index
    valid = (kk >= 0) & (kk < K)
    band = np.where(valid[:, :, None], w_kT[np.clip(kk, 0, K - 1)], 0.0)  # (42, 40, C)
    wconv_big = np.zeros((KA_PAD, L * C), np.float32)
    wconv_big[:L + 2] = band.reshape(L + 2, L * C)
    wconv_big[BIAS_COL] = np.tile(bc, L)               # row hit by the ones column

    # fc1 weight reordered to row index t*C + c (matches PyTorch flatten c*L + t),
    # output dim padded 64 -> 128 for a lane-dense h slab.
    w1r = np.zeros((L * C, HP), np.float32)
    w1r[:, :H] = w1.reshape(H, C, L).transpose(2, 1, 0).reshape(L * C, H)
    b1r = np.zeros((1, HP), np.float32)
    b1r[0, :H] = b1

    # fc2 padded to (128, 128) for lane-dense output stores.
    w2p = np.zeros((HP, OUT_PAD), np.float32)
    w2p[:H, :O] = w2.T
    b2p = np.zeros((1, OUT_PAD), np.float32)
    b2p[0, :O] = b2

    return tuple(jnp.asarray(a) for a in (wconv_big, w1r, b1r, w2p, b2p))


def _tb_cap():
    try:
        kind = jax.devices()[0].device_kind.lower()
    except Exception:
        kind = ""
    # v5e: 128-row MXU -> TB<=128 (bigger only adds store pressure).
    # v6e / v7x: 256-row MXU -> TB<=256 fills the systolic array.
    return 128 if "v5" in kind else 256


@jax.jit
def cnn1d_forward(x, prepared):
    """x: (B, 40) float32; prepared: output of prepare_params()."""
    wconv_big, w1r, b1r, w2p, b2p = prepared
    B = x.shape[0]
    assert x.shape[1] == L

    TB = min(_tb_cap(), ((B + 7) // 8) * 8)            # sublane-aligned batch tile
    B_pad = pl.cdiv(B, TB) * TB

    # Per-call glue: zero-padded input + ones column that folds in the conv bias.
    x_aug = jnp.zeros((B_pad, KA_PAD), jnp.float32)
    x_aug = x_aug.at[:B, 1:L + 1].set(x.astype(jnp.float32))
    x_aug = x_aug.at[:, BIAS_COL].set(1.0)

    out_full = pl.pallas_call(
        cnn1d_kernel,
        out_shape=jax.ShapeDtypeStruct((B_pad, OUT_PAD), jnp.float32),
        grid=(B_pad // TB,),
        in_specs=[
            pl.BlockSpec((TB, KA_PAD), lambda i: (i, 0)),       # batch tile of aug. input
            pl.BlockSpec((KA_PAD, L * C), lambda i: (0, 0)),    # conv Toeplitz weight (resident)
            pl.BlockSpec((L * C, HP), lambda i: (0, 0)),        # fc1 weight (reordered, padded)
            pl.BlockSpec((1, HP), lambda i: (0, 0)),            # fc1 bias (padded)
            pl.BlockSpec((HP, OUT_PAD), lambda i: (0, 0)),      # fc2 weight (padded)
            pl.BlockSpec((1, OUT_PAD), lambda i: (0, 0)),       # fc2 bias (padded)
        ],
        out_specs=pl.BlockSpec((TB, OUT_PAD), lambda i: (i, 0)),
        compiler_params=pltpu.CompilerParams(
            dimension_semantics=("parallel",)),
    )(x_aug, wconv_big, w1r, b1r, w2p, b2p)

    return out_full[:B, :O]


def ref_forward(x, params):
    """Pure-JAX reference matching the PyTorch forward exactly."""
    wc, bc, w1, b1, w2, b2 = params
    xp = x[:, None, :]                                 # (B, 1, 40)  NCL
    conv = jax.lax.conv_general_dilated(
        xp, wc, window_strides=(1,), padding=((1, 1),),
        dimension_numbers=("NCH", "OIH", "NCH"))
    conv = conv + bc[None, :, None]
    conv = jnp.maximum(conv, 0.0)
    flat = conv.reshape(x.shape[0], -1)                # flatten: index c*40 + t
    h1 = jnp.maximum(flat @ w1.T + b1, 0.0)
    return h1 @ w2.T + b2


def init_params(key):
    """Deterministic synthetic parameters with PyTorch module shapes."""
    ks = jax.random.split(key, 6)
    wc = jax.random.normal(ks[0], (C, 1, K), jnp.float32) * 0.3    # Conv1d(1, 64, 3)
    bc = jax.random.normal(ks[1], (C,), jnp.float32) * 0.1
    w1 = jax.random.normal(ks[2], (H, C * L), jnp.float32) * 0.02  # Linear(2560, 64)
    b1 = jax.random.normal(ks[3], (H,), jnp.float32) * 0.1
    w2 = jax.random.normal(ks[4], (O, H), jnp.float32) * 0.1       # Linear(64, 2)
    b2 = jax.random.normal(ks[5], (O,), jnp.float32) * 0.1
    return (wc, bc, w1, b1, w2, b2)


if __name__ == "__main__":
    key = jax.random.PRNGKey(0)
    k_x, k_p = jax.random.split(key)
    B = 4
    x = jax.random.normal(k_x, (B, L), jnp.float32)
    params = init_params(k_p)
    prepared = prepare_params(params)      # one-time weight prep, off the per-call path

    out = jax.block_until_ready(cnn1d_forward(x, prepared))
    ref = jax.block_until_ready(ref_forward(x, params))

    assert out.shape == (B, O)
    np.testing.assert_allclose(np.asarray(out), np.asarray(ref), rtol=1e-4, atol=1e-4)
    print("KERNEL_OK")
</pallas_src>

<mosaic_0001>
module attributes {stable_mosaic.version = 11 : i64} {
  func.func @cnn1d_kernel(%arg0: i32, %arg1: memref<8x48xf32, #tpu.memory_space<vmem>>, %arg2: memref<48x2560xf32, #tpu.memory_space<vmem>>, %arg3: memref<2560x128xf32, #tpu.memory_space<vmem>>, %arg4: memref<1x128xf32, #tpu.memory_space<vmem>>, %arg5: memref<128x128xf32, #tpu.memory_space<vmem>>, %arg6: memref<1x128xf32, #tpu.memory_space<vmem>>, %arg7: memref<8x128xf32, #tpu.memory_space<vmem>>) attributes {dimension_semantics = [#tpu.dimension_semantics<parallel>], iteration_bounds = array<i64: 1>, scalar_prefetch = 0 : i64, scratch_operands = 0 : i64, tpu.core_type = #tpu.core_type<tc>, window_params = [{transform_indices = @transform_0, window_bounds = array<i64: 8, 48>}, {pipeline_mode = #tpu.pipeline_mode<synchronous>, transform_indices = @transform_1, window_bounds = array<i64: 48, 2560>}, {pipeline_mode = #tpu.pipeline_mode<synchronous>, transform_indices = @transform_2, window_bounds = array<i64: 2560, 128>}, {pipeline_mode = #tpu.pipeline_mode<synchronous>, transform_indices = @transform_3, window_bounds = array<i64: 1, 128>}, {pipeline_mode = #tpu.pipeline_mode<synchronous>, transform_indices = @transform_4, window_bounds = array<i64: 128, 128>}, {pipeline_mode = #tpu.pipeline_mode<synchronous>, transform_indices = @transform_5, window_bounds = array<i64: 1, 128>}, {transform_indices = @transform_6, window_bounds = array<i64: 8, 128>}]} {
    %c0 = arith.constant 0 : index
    %c0_0 = arith.constant 0 : index
    %0 = vector.load %arg1[%c0, %c0_0] : memref<8x48xf32, #tpu.memory_space<vmem>>, vector<8x48xf32>
    %cst = arith.constant 0.000000e+00 : f32
    %1 = vector.broadcast %cst : f32 to vector<8x128xf32>
    %c0_i32 = arith.constant 0 : i32
    %c256_i32 = arith.constant 256 : i32
    %2 = arith.muli %c0_i32, %c256_i32 : i32
    %3 = tpu.assume_multiple %2, 256 : i32
    %c0_1 = arith.constant 0 : index
    %4 = arith.index_cast %3 : i32 to index
    %5 = vector.load %arg2[%c0_1, %4] : memref<48x2560xf32, #tpu.memory_space<vmem>>, vector<48x256xf32>
    %cst_2 = arith.constant dense<0.000000e+00> : vector<8x256xf32>
    %6 = tpu.matmul %0, %5, %cst_2 {dimension_numbers = #tpu.dot_dimension_numbers<[1], [0], [0], [1], [0, 0, 1, 1], [], []>} : vector<8x48xf32>, vector<48x256xf32>, vector<8x256xf32> -> vector<8x256xf32>
    %cst_3 = arith.constant 0.000000e+00 : f32
    %7 = vector.broadcast %cst_3 : f32 to vector<8x256xf32>
    %8 = arith.maximumf %6, %7 : vector<8x256xf32>
    %9 = arith.index_cast %3 : i32 to index
    %c0_4 = arith.constant 0 : index
    %10 = vector.load %arg3[%9, %c0_4] : memref<2560x128xf32, #tpu.memory_space<vmem>>, vector<256x128xf32>
    %cst_5 = arith.constant dense<0.000000e+00> : vector<8x128xf32>
    %11 = tpu.matmul %8, %10, %cst_5 {dimension_numbers = #tpu.dot_dimension_numbers<[1], [0], [0], [1], [0, 0, 1, 1], [], []>} : vector<8x256xf32>, vector<256x128xf32>, vector<8x128xf32> -> vector<8x128xf32>
    %12 = arith.addf %1, %11 : vector<8x128xf32>
    %c1_i32 = arith.constant 1 : i32
    %c256_i32_6 = arith.constant 256 : i32
    %13 = arith.muli %c1_i32, %c256_i32_6 : i32
    %14 = tpu.assume_multiple %13, 256 : i32
    %c0_7 = arith.constant 0 : index
    %15 = arith.index_cast %14 : i32 to index
    %16 = vector.load %arg2[%c0_7, %15] : memref<48x2560xf32, #tpu.memory_space<vmem>>, vector<48x256xf32>
    %cst_8 = arith.constant dense<0.000000e+00> : vector<8x256xf32>
    %17 = tpu.matmul %0, %16, %cst_8 {dimension_numbers = #tpu.dot_dimension_numbers<[1], [0], [0], [1], [0, 0, 1, 1], [], []>} : vector<8x48xf32>, vector<48x256xf32>, vector<8x256xf32> -> vector<8x256xf32>
    %cst_9 = arith.constant 0.000000e+00 : f32
    %18 = vector.broadcast %cst_9 : f32 to vector<8x256xf32>
    %19 = arith.maximumf %17, %18 : vector<8x256xf32>
    %20 = arith.index_cast %14 : i32 to index
    %c0_10 = arith.constant 0 : index
    %21 = vector.load %arg3[%20, %c0_10] : memref<2560x128xf32, #tpu.memory_space<vmem>>, vector<256x128xf32>
    %cst_11 = arith.constant dense<0.000000e+00> : vector<8x128xf32>
    %22 = tpu.matmul %19, %21, %cst_11 {dimension_numbers = #tpu.dot_dimension_numbers<[1], [0], [0], [1], [0, 0, 1, 1], [], []>} : vector<8x256xf32>, vector<256x128xf32>, vector<8x128xf32> -> vector<8x128xf32>
    %23 = arith.addf %12, %22 : vector<8x128xf32>
    %c2_i32 = arith.constant 2 : i32
    %c256_i32_12 = arith.constant 256 : i32
    %24 = arith.muli %c2_i32, %c256_i32_12 : i32
    %25 = tpu.assume_multiple %24, 256 : i32
    %c0_13 = arith.constant 0 : index
    %26 = arith.index_cast %25 : i32 to index
    %27 = vector.load %arg2[%c0_13, %26] : memref<48x2560xf32, #tpu.memory_space<vmem>>, vector<48x256xf32>
    %cst_14 = arith.constant dense<0.000000e+00> : vector<8x256xf32>
    %28 = tpu.matmul %0, %27, %cst_14 {dimension_numbers = #tpu.dot_dimension_numbers<[1], [0], [0], [1], [0, 0, 1, 1], [], []>} : vector<8x48xf32>, vector<48x256xf32>, vector<8x256xf32> -> vector<8x256xf32>
    %cst_15 = arith.constant 0.000000e+00 : f32
    %29 = vector.broadcast %cst_15 : f32 to vector<8x256xf32>
    %30 = arith.maximumf %28, %29 : vector<8x256xf32>
    %31 = arith.index_cast %25 : i32 to index
    %c0_16 = arith.constant 0 : index
    %32 = vector.load %arg3[%31, %c0_16] : memref<2560x128xf32, #tpu.memory_space<vmem>>, vector<256x128xf32>
    %cst_17 = arith.constant dense<0.000000e+00> : vector<8x128xf32>
    %33 = tpu.matmul %30, %32, %cst_17 {dimension_numbers = #tpu.dot_dimension_numbers<[1], [0], [0], [1], [0, 0, 1, 1], [], []>} : vector<8x256xf32>, vector<256x128xf32>, vector<8x128xf32> -> vector<8x128xf32>
    %34 = arith.addf %23, %33 : vector<8x128xf32>
    %c3_i32 = arith.constant 3 : i32
    %c256_i32_18 = arith.constant 256 : i32
    %35 = arith.muli %c3_i32, %c256_i32_18 : i32
    %36 = tpu.assume_multiple %35, 256 : i32
    %c0_19 = arith.constant 0 : index
    %37 = arith.index_cast %36 : i32 to index
    %38 = vector.load %arg2[%c0_19, %37] : memref<48x2560xf32, #tpu.memory_space<vmem>>, vector<48x256xf32>
    %cst_20 = arith.constant dense<0.000000e+00> : vector<8x256xf32>
    %39 = tpu.matmul %0, %38, %cst_20 {dimension_numbers = #tpu.dot_dimension_numbers<[1], [0], [0], [1], [0, 0, 1, 1], [], []>} : vector<8x48xf32>, vector<48x256xf32>, vector<8x256xf32> -> vector<8x256xf32>
    %cst_21 = arith.constant 0.000000e+00 : f32
    %40 = vector.broadcast %cst_21 : f32 to vector<8x256xf32>
    %41 = arith.maximumf %39, %40 : vector<8x256xf32>
    %42 = arith.index_cast %36 : i32 to index
    %c0_22 = arith.constant 0 : index
    %43 = vector.load %arg3[%42, %c0_22] : memref<2560x128xf32, #tpu.memory_space<vmem>>, vector<256x128xf32>
    %cst_23 = arith.constant dense<0.000000e+00> : vector<8x128xf32>
    %44 = tpu.matmul %41, %43, %cst_23 {dimension_numbers = #tpu.dot_dimension_numbers<[1], [0], [0], [1], [0, 0, 1, 1], [], []>} : vector<8x256xf32>, vector<256x128xf32>, vector<8x128xf32> -> vector<8x128xf32>
    %45 = arith.addf %34, %44 : vector<8x128xf32>
    %c4_i32 = arith.constant 4 : i32
    %c256_i32_24 = arith.constant 256 : i32
    %46 = arith.muli %c4_i32, %c256_i32_24 : i32
    %47 = tpu.assume_multiple %46, 256 : i32
    %c0_25 = arith.constant 0 : index
    %48 = arith.index_cast %47 : i32 to index
    %49 = vector.load %arg2[%c0_25, %48] : memref<48x2560xf32, #tpu.memory_space<vmem>>, vector<48x256xf32>
    %cst_26 = arith.constant dense<0.000000e+00> : vector<8x256xf32>
    %50 = tpu.matmul %0, %49, %cst_26 {dimension_numbers = #tpu.dot_dimension_numbers<[1], [0], [0], [1], [0, 0, 1, 1], [], []>} : vector<8x48xf32>, vector<48x256xf32>, vector<8x256xf32> -> vector<8x256xf32>
    %cst_27 = arith.constant 0.000000e+00 : f32
    %51 = vector.broadcast %cst_27 : f32 to vector<8x256xf32>
    %52 = arith.maximumf %50, %51 : vector<8x256xf32>
    %53 = arith.index_cast %47 : i32 to index
    %c0_28 = arith.constant 0 : index
    %54 = vector.load %arg3[%53, %c0_28] : memref<2560x128xf32, #tpu.memory_space<vmem>>, vector<256x128xf32>
    %cst_29 = arith.constant dense<0.000000e+00> : vector<8x128xf32>
    %55 = tpu.matmul %52, %54, %cst_29 {dimension_numbers = #tpu.dot_dimension_numbers<[1], [0], [0], [1], [0, 0, 1, 1], [], []>} : vector<8x256xf32>, vector<256x128xf32>, vector<8x128xf32> -> vector<8x128xf32>
    %56 = arith.addf %45, %55 : vector<8x128xf32>
    %c5_i32 = arith.constant 5 : i32
    %c256_i32_30 = arith.constant 256 : i32
    %57 = arith.muli %c5_i32, %c256_i32_30 : i32
    %58 = tpu.assume_multiple %57, 256 : i32
    %c0_31 = arith.constant 0 : index
    %59 = arith.index_cast %58 : i32 to index
    %60 = vector.load %arg2[%c0_31, %59] : memref<48x2560xf32, #tpu.memory_space<vmem>>, vector<48x256xf32>
    %cst_32 = arith.constant dense<0.000000e+00> : vector<8x256xf32>
    %61 = tpu.matmul %0, %60, %cst_32 {dimension_numbers = #tpu.dot_dimension_numbers<[1], [0], [0], [1], [0, 0, 1, 1], [], []>} : vector<8x48xf32>, vector<48x256xf32>, vector<8x256xf32> -> vector<8x256xf32>
    %cst_33 = arith.constant 0.000000e+00 : f32
    %62 = vector.broadcast %cst_33 : f32 to vector<8x256xf32>
    %63 = arith.maximumf %61, %62 : vector<8x256xf32>
    %64 = arith.index_cast %58 : i32 to index
    %c0_34 = arith.constant 0 : index
    %65 = vector.load %arg3[%64, %c0_34] : memref<2560x128xf32, #tpu.memory_space<vmem>>, vector<256x128xf32>
    %cst_35 = arith.constant dense<0.000000e+00> : vector<8x128xf32>
    %66 = tpu.matmul %63, %65, %cst_35 {dimension_numbers = #tpu.dot_dimension_numbers<[1], [0], [0], [1], [0, 0, 1, 1], [], []>} : vector<8x256xf32>, vector<256x128xf32>, vector<8x128xf32> -> vector<8x128xf32>
    %67 = arith.addf %56, %66 : vector<8x128xf32>
    %c6_i32 = arith.constant 6 : i32
    %c256_i32_36 = arith.constant 256 : i32
    %68 = arith.muli %c6_i32, %c256_i32_36 : i32
    %69 = tpu.assume_multiple %68, 256 : i32
    %c0_37 = arith.constant 0 : index
    %70 = arith.index_cast %69 : i32 to index
    %71 = vector.load %arg2[%c0_37, %70] : memref<48x2560xf32, #tpu.memory_space<vmem>>, vector<48x256xf32>
    %cst_38 = arith.constant dense<0.000000e+00> : vector<8x256xf32>
    %72 = tpu.matmul %0, %71, %cst_38 {dimension_numbers = #tpu.dot_dimension_numbers<[1], [0], [0], [1], [0, 0, 1, 1], [], []>} : vector<8x48xf32>, vector<48x256xf32>, vector<8x256xf32> -> vector<8x256xf32>
    %cst_39 = arith.constant 0.000000e+00 : f32
    %73 = vector.broadcast %cst_39 : f32 to vector<8x256xf32>
    %74 = arith.maximumf %72, %73 : vector<8x256xf32>
    %75 = arith.index_cast %69 : i32 to index
    %c0_40 = arith.constant 0 : index
    %76 = vector.load %arg3[%75, %c0_40] : memref<2560x128xf32, #tpu.memory_space<vmem>>, vector<256x128xf32>
    %cst_41 = arith.constant dense<0.000000e+00> : vector<8x128xf32>
    %77 = tpu.matmul %74, %76, %cst_41 {dimension_numbers = #tpu.dot_dimension_numbers<[1], [0], [0], [1], [0, 0, 1, 1], [], []>} : vector<8x256xf32>, vector<256x128xf32>, vector<8x128xf32> -> vector<8x128xf32>
    %78 = arith.addf %67, %77 : vector<8x128xf32>
    %c7_i32 = arith.constant 7 : i32
    %c256_i32_42 = arith.constant 256 : i32
    %79 = arith.muli %c7_i32, %c256_i32_42 : i32
    %80 = tpu.assume_multiple %79, 256 : i32
    %c0_43 = arith.constant 0 : index
    %81 = arith.index_cast %80 : i32 to index
    %82 = vector.load %arg2[%c0_43, %81] : memref<48x2560xf32, #tpu.memory_space<vmem>>, vector<48x256xf32>
    %cst_44 = arith.constant dense<0.000000e+00> : vector<8x256xf32>
    %83 = tpu.matmul %0, %82, %cst_44 {dimension_numbers = #tpu.dot_dimension_numbers<[1], [0], [0], [1], [0, 0, 1, 1], [], []>} : vector<8x48xf32>, vector<48x256xf32>, vector<8x256xf32> -> vector<8x256xf32>
    %cst_45 = arith.constant 0.000000e+00 : f32
    %84 = vector.broadcast %cst_45 : f32 to vector<8x256xf32>
    %85 = arith.maximumf %83, %84 : vector<8x256xf32>
    %86 = arith.index_cast %80 : i32 to index
    %c0_46 = arith.constant 0 : index
    %87 = vector.load %arg3[%86, %c0_46] : memref<2560x128xf32, #tpu.memory_space<vmem>>, vector<256x128xf32>
    %cst_47 = arith.constant dense<0.000000e+00> : vector<8x128xf32>
    %88 = tpu.matmul %85, %87, %cst_47 {dimension_numbers = #tpu.dot_dimension_numbers<[1], [0], [0], [1], [0, 0, 1, 1], [], []>} : vector<8x256xf32>, vector<256x128xf32>, vector<8x128xf32> -> vector<8x128xf32>
    %89 = arith.addf %78, %88 : vector<8x128xf32>
    %c8_i32 = arith.constant 8 : i32
    %c256_i32_48 = arith.constant 256 : i32
    %90 = arith.muli %c8_i32, %c256_i32_48 : i32
    %91 = tpu.assume_multiple %90, 256 : i32
    %c0_49 = arith.constant 0 : index
    %92 = arith.index_cast %91 : i32 to index
    %93 = vector.load %arg2[%c0_49, %92] : memref<48x2560xf32, #tpu.memory_space<vmem>>, vector<48x256xf32>
    %cst_50 = arith.constant dense<0.000000e+00> : vector<8x256xf32>
    %94 = tpu.matmul %0, %93, %cst_50 {dimension_numbers = #tpu.dot_dimension_numbers<[1], [0], [0], [1], [0, 0, 1, 1], [], []>} : vector<8x48xf32>, vector<48x256xf32>, vector<8x256xf32> -> vector<8x256xf32>
    %cst_51 = arith.constant 0.000000e+00 : f32
    %95 = vector.broadcast %cst_51 : f32 to vector<8x256xf32>
    %96 = arith.maximumf %94, %95 : vector<8x256xf32>
    %97 = arith.index_cast %91 : i32 to index
    %c0_52 = arith.constant 0 : index
    %98 = vector.load %arg3[%97, %c0_52] : memref<2560x128xf32, #tpu.memory_space<vmem>>, vector<256x128xf32>
    %cst_53 = arith.constant dense<0.000000e+00> : vector<8x128xf32>
    %99 = tpu.matmul %96, %98, %cst_53 {dimension_numbers = #tpu.dot_dimension_numbers<[1], [0], [0], [1], [0, 0, 1, 1], [], []>} : vector<8x256xf32>, vector<256x128xf32>, vector<8x128xf32> -> vector<8x128xf32>
    %100 = arith.addf %89, %99 : vector<8x128xf32>
    %c9_i32 = arith.constant 9 : i32
    %c256_i32_54 = arith.constant 256 : i32
    %101 = arith.muli %c9_i32, %c256_i32_54 : i32
    %102 = tpu.assume_multiple %101, 256 : i32
    %c0_55 = arith.constant 0 : index
    %103 = arith.index_cast %102 : i32 to index
    %104 = vector.load %arg2[%c0_55, %103] : memref<48x2560xf32, #tpu.memory_space<vmem>>, vector<48x256xf32>
    %cst_56 = arith.constant dense<0.000000e+00> : vector<8x256xf32>
    %105 = tpu.matmul %0, %104, %cst_56 {dimension_numbers = #tpu.dot_dimension_numbers<[1], [0], [0], [1], [0, 0, 1, 1], [], []>} : vector<8x48xf32>, vector<48x256xf32>, vector<8x256xf32> -> vector<8x256xf32>
    %cst_57 = arith.constant 0.000000e+00 : f32
    %106 = vector.broadcast %cst_57 : f32 to vector<8x256xf32>
    %107 = arith.maximumf %105, %106 : vector<8x256xf32>
    %108 = arith.index_cast %102 : i32 to index
    %c0_58 = arith.constant 0 : index
    %109 = vector.load %arg3[%108, %c0_58] : memref<2560x128xf32, #tpu.memory_space<vmem>>, vector<256x128xf32>
    %cst_59 = arith.constant dense<0.000000e+00> : vector<8x128xf32>
    %110 = tpu.matmul %107, %109, %cst_59 {dimension_numbers = #tpu.dot_dimension_numbers<[1], [0], [0], [1], [0, 0, 1, 1], [], []>} : vector<8x256xf32>, vector<256x128xf32>, vector<8x128xf32> -> vector<8x128xf32>
    %111 = arith.addf %100, %110 : vector<8x128xf32>
    %c10_i32 = arith.constant 10 : i32
    %c0_60 = arith.constant 0 : index
    %c0_61 = arith.constant 0 : index
    %112 = vector.load %arg4[%c0_60, %c0_61] : memref<1x128xf32, #tpu.memory_space<vmem>>, vector<1x128xf32>
    %113 = vector.broadcast %112 : vector<1x128xf32> to vector<8x128xf32>
    %114 = arith.addf %111, %113 : vector<8x128xf32>
    %cst_62 = arith.constant 0.000000e+00 : f32
    %115 = vector.broadcast %cst_62 : f32 to vector<8x128xf32>
    %116 = arith.maximumf %114, %115 : vector<8x128xf32>
    %c0_63 = arith.constant 0 : index
    %c0_64 = arith.constant 0 : index
    %117 = vector.load %arg5[%c0_63, %c0_64] : memref<128x128xf32, #tpu.memory_space<vmem>>, vector<128x128xf32>
    %cst_65 = arith.constant dense<0.000000e+00> : vector<8x128xf32>
    %118 = tpu.matmul %116, %117, %cst_65 {dimension_numbers = #tpu.dot_dimension_numbers<[1], [0], [0], [1], [0, 0, 1, 1], [], []>} : vector<8x128xf32>, vector<128x128xf32>, vector<8x128xf32> -> vector<8x128xf32>
    %c0_66 = arith.constant 0 : index
    %c0_67 = arith.constant 0 : index
    %119 = vector.load %arg6[%c0_66, %c0_67] : memref<1x128xf32, #tpu.memory_space<vmem>>, vector<1x128xf32>
    %120 = vector.broadcast %119 : vector<1x128xf32> to vector<8x128xf32>
    %121 = arith.addf %118, %120 : vector<8x128xf32>
    %c0_68 = arith.constant 0 : index
    %c0_69 = arith.constant 0 : index
    %122 = vector.load %arg7[%c0_68, %c0_69] : memref<8x128xf32, #tpu.memory_space<vmem>>, vector<8x128xf32>
    tpu.vector_store %arg7[%c0_68, %c0_69], %121 {strides = array<i32>} : memref<8x128xf32, #tpu.memory_space<vmem>>, vector<8x128xf32>,
    return
  }
  func.func @transform_0(%arg0: i32) -> (i32, i32) {
    %c0_i32 = arith.constant 0 : i32
    %c0_i32_0 = arith.constant 0 : i32
    return %arg0, %c0_i32 : i32, i32
  }
  func.func @transform_1(%arg0: i32) -> (i32, i32) {
    %c0_i32 = arith.constant 0 : i32
    %c0_i32_0 = arith.constant 0 : i32
    %c0_i32_1 = arith.constant 0 : i32
    return %c0_i32, %c0_i32_0 : i32, i32
  }
  func.func @transform_2(%arg0: i32) -> (i32, i32) {
    %c0_i32 = arith.constant 0 : i32
    %c0_i32_0 = arith.constant 0 : i32
    %c0_i32_1 = arith.constant 0 : i32
    return %c0_i32, %c0_i32_0 : i32, i32
  }
  func.func @transform_3(%arg0: i32) -> (i32, i32) {
    %c0_i32 = arith.constant 0 : i32
    %c0_i32_0 = arith.constant 0 : i32
    %c0_i32_1 = arith.constant 0 : i32
    return %c0_i32, %c0_i32_0 : i32, i32
  }
  func.func @transform_4(%arg0: i32) -> (i32, i32) {
    %c0_i32 = arith.constant 0 : i32
    %c0_i32_0 = arith.constant 0 : i32
    %c0_i32_1 = arith.constant 0 : i32
    return %c0_i32, %c0_i32_0 : i32, i32
  }
  func.func @transform_5(%arg0: i32) -> (i32, i32) {
    %c0_i32 = arith.constant 0 : i32
    %c0_i32_0 = arith.constant 0 : i32
    %c0_i32_1 = arith.constant 0 : i32
    return %c0_i32, %c0_i32_0 : i32, i32
  }
  func.func @transform_6(%arg0: i32) -> (i32, i32) {
    %c0_i32 = arith.constant 0 : i32
    %c0_i32_0 = arith.constant 0 : i32
    return %arg0, %c0_i32 : i32, i32
  }
}

</mosaic_0001>

<llo_original>
// kernel: cnn1d_forward.1
$region0: #{cnn1d_forward.1}
  #allocation0 [shape = 'u32[]', space=smem, size = 0x4, offset = 0x4, fixed_abs, tag = 'smem constant byte address 0x4 - core index']
  #allocation1 [shape = 'u32[144,128]{1,0:T(1,128)}', space=vmem, size = 0x12000, scoped, tag = 'internal scratch']
  %s0 = inlined_call_operand.vmem [shape: f32[8,48], index: 0, kind: input, shape index: {}]
  %s1 = inlined_call_operand.hbm [shape: f32[48,2560], index: 1, kind: input, shape index: {}]
  %s2 = inlined_call_operand.hbm [shape: f32[2560,128], index: 2, kind: input, shape index: {}]
  %s3 = inlined_call_operand.hbm [shape: f32[1,128], index: 3, kind: input, shape index: {}]
  %s4 = inlined_call_operand.hbm [shape: f32[128,128], index: 4, kind: input, shape index: {}]
  %s5 = inlined_call_operand.hbm [shape: f32[1,128], index: 5, kind: input, shape index: {}]
  %s6 = inlined_call_operand.vmem [shape: f32[8,128], index: 6, kind: output, shape index: {}]
  %s7 = sld [smem:[#allocation0]]
  $region54: #{cnn1d_forward.1} parent=0
    _
  %s9 = ssub.s32 1, %s7
  %s10 = scalar_select 0, %s9, %s7
  $region1: #{cnn1d_forward.1} parent=0
    #allocation2 [shape = 'u8[491520]{0}', space=vmem, size = 0x78000, scoped, tag = 'input window, operand 1, single buffered']
    #allocation3 [shape = 's32[1]{0}', space=sflag, size = 0x4, scoped, tag = 'scoped memory for cnn1d_forward.1']
    #allocation4 [shape = 'u8[1310720]{0}', space=vmem, size = 0x140000, scoped, tag = 'input window, operand 2, single buffered']
    #allocation5 [shape = 's32[1]{0}', space=sflag, size = 0x4, scoped, tag = 'scoped memory for cnn1d_forward.1']
    #allocation6 [shape = 'u8[512]{0}', space=vmem, size = 0x400, scoped, tag = 'input window, operand 3, single buffered']
    #allocation7 [shape = 'u8[65536]{0}', space=vmem, size = 0x10000, scoped, tag = 'input window, operand 4, single buffered']
    #allocation8 [shape = 's32[1]{0}', space=sflag, size = 0x4, scoped, tag = 'scoped memory for cnn1d_forward.1']
    #allocation9 [shape = 'u8[512]{0}', space=vmem, size = 0x400, scoped, tag = 'input window, operand 5, single buffered']
    %11 = vsyncpa [#allocation3], 0
    %12 = vsyncpa [#allocation5], 0
    %13 = vsyncpa [#allocation8], 0
    // Predicated region
    $region2: #{cnn1d_forward.1} parent=1 // pred_check
      _
    $region3: #{cnn1d_forward.1} parent=1 // pred_check_branch
      %15 = sbr.rel (0) target = $region5
    $region4: #{cnn1d_forward.1} parent=1 // pred_region
      _
    $region5: #{cnn1d_forward.1} parent=1 // pred_fallthru
      _
    // Predicated region
    $region6: #{cnn1d_forward.1} parent=1 // pred_check
      _
    $region7: #{cnn1d_forward.1} parent=1 // pred_check_branch
      %17 = sbr.rel (0) target = $region9
    $region8: #{cnn1d_forward.1} parent=1 // pred_region
      %s19 = ssub.s32 15360, 15360
      %20 = vsyncadd [#allocation3], %s19
      %s21 = sshll.u32 [#allocation2], 4
      %s22 = int_to_ptr.vmem [resolvable:$true] %s21
      %27 = dma.hbm_to_vmem [thread:$0]  %s1, 15360, %s22, [#allocation3], 2560, 2560, 160
    $region9: #{cnn1d_forward.1} parent=1 // pred_fallthru
      _
    // Predicated region
    $region10: #{cnn1d_forward.1} parent=1 // pred_check
      _
    $region11: #{cnn1d_forward.1} parent=1 // pred_check_branch
      %29 = sbr.rel (0) target = $region13
    $region12: #{cnn1d_forward.1} parent=1 // pred_region
      %s31 = ssub.s32 40960, 40960
      %32 = vsyncadd [#allocation5], %s31
      %s33 = sshll.u32 [#allocation4], 4
      %s34 = int_to_ptr.vmem [resolvable:$true] %s33
      %39 = dma.hbm_to_vmem [thread:$0]  %s2, 40960, %s34, [#allocation5], 128, 128, 8
    $region13: #{cnn1d_forward.1} parent=1 // pred_fallthru
      _
    // Predicated region
    $region14: #{cnn1d_forward.1} parent=1 // pred_check
      _
    $region15: #{cnn1d_forward.1} parent=1 // pred_check_branch
      %41 = sbr.rel (0) target = $region17
    $region16: #{cnn1d_forward.1} parent=1 // pred_region
      %s43 = ssub.s32 16, 16
      %44 = vsyncadd [#allocation5], %s43
      %s46 = sshll.u32 [#allocation6], 4
      %s47 = int_to_ptr.vmem [resolvable:$true] %s46
      %49 = dma.hbm_to_vmem [thread:$0]  %s3, 16, %s47, [#allocation5]
    $region17: #{cnn1d_forward.1} parent=1 // pred_fallthru
      _
    // Predicated region
    $region18: #{cnn1d_forward.1} parent=1 // pred_check
      _
    $region19: #{cnn1d_forward.1} parent=1 // pred_check_branch
      %51 = sbr.rel (0) target = $region21
    $region20: #{cnn1d_forward.1} parent=1 // pred_region
      %s53 = ssub.s32 2048, 2048
      %54 = vsyncadd [#allocation8], %s53
      %s55 = sshll.u32 [#allocation7], 4
      %s56 = int_to_ptr.vmem [resolvable:$true] %s55
      %61 = dma.hbm_to_vmem [thread:$0]  %s4, 2048, %s56, [#allocation8], 128, 128, 8
    $region21: #{cnn1d_forward.1} parent=1 // pred_fallthru
      _
    // Predicated region
    $region22: #{cnn1d_forward.1} parent=1 // pred_check
      _
    $region23: #{cnn1d_forward.1} parent=1 // pred_check_branch
      %63 = sbr.rel (0) target = $region25
    $region24: #{cnn1d_forward.1} parent=1 // pred_region
      %s65 = ssub.s32 16, 16
      %66 = vsyncadd [#allocation8], %s65
      %s68 = sshll.u32 [#allocation9], 4
      %s69 = int_to_ptr.vmem [resolvable:$true] %s68
      %71 = dma.hbm_to_vmem [thread:$0]  %s5, 16, %s69, [#allocation8]
    $region25: #{cnn1d_forward.1} parent=1 // pred_fallthru
      _
    // Predicated region
    $region26: #{cnn1d_forward.1} parent=1 // pred_check
      _
    $region27: #{cnn1d_forward.1} parent=1 // pred_check_branch
      %73 = sbr.rel (0) target = $region29
    $region28: #{cnn1d_forward.1} parent=1 // pred_region
      %74 = dma.done [#allocation3], 15360
    $region29: #{cnn1d_forward.1} parent=1 // pred_fallthru
      _
    // Predicated region
    $region30: #{cnn1d_forward.1} parent=1 // pred_check
      _
    $region31: #{cnn1d_forward.1} parent=1 // pred_check_branch
      %76 = sbr.rel (0) target = $region33
    $region32: #{cnn1d_forward.1} parent=1 // pred_region
      %77 = dma.done [#allocation5], 40960
    $region33: #{cnn1d_forward.1} parent=1 // pred_fallthru
      _
    // Predicated region
    $region34: #{cnn1d_forward.1} parent=1 // pred_check
      _
    $region35: #{cnn1d_forward.1} parent=1 // pred_check_branch
      %79 = sbr.rel (0) target = $region37
    $region36: #{cnn1d_forward.1} parent=1 // pred_region
      %80 = dma.done [#allocation5], 16
    $region37: #{cnn1d_forward.1} parent=1 // pred_fallthru
      _
    // Predicated region
    $region38: #{cnn1d_forward.1} parent=1 // pred_check
      _
    $region39: #{cnn1d_forward.1} parent=1 // pred_check_branch
      %82 = sbr.rel (0) target = $region41
    $region40: #{cnn1d_forward.1} parent=1 // pred_region
      %83 = dma.done [#allocation8], 2048
    $region41: #{cnn1d_forward.1} parent=1 // pred_fallthru
      _
    // Predicated region
    $region42: #{cnn1d_forward.1} parent=1 // pred_check
      _
    $region43: #{cnn1d_forward.1} parent=1 // pred_check_branch
      %85 = sbr.rel (0) target = $region45
    $region44: #{cnn1d_forward.1} parent=1 // pred_region
      %86 = dma.done [#allocation8], 16
    $region45: #{cnn1d_forward.1} parent=1 // pred_fallthru
      _
    %v87 = vld [vmem:[%s0] sm:$0xff]
    %v88 = vld [vmem:[#allocation2] sm:$0xff]
    %v89 = vld [vmem:[#allocation2 + $0x8] sm:$0xff]
    %v90 = vld [vmem:[#allocation2 + $0xa0] sm:$0xff]
    %v91 = vld [vmem:[#allocation2 + $0xa8] sm:$0xff]
    %v92 = vld [vmem:[#allocation2 + $0x140] sm:$0xff]
    %v93 = vld [vmem:[#allocation2 + $0x148] sm:$0xff]
    %v94 = vld [vmem:[#allocation2 + $0x1e0] sm:$0xff]
    %v95 = vld [vmem:[#allocation2 + $0x1e8] sm:$0xff]
    %v96 = vld [vmem:[#allocation2 + $0x280] sm:$0xff]
    %v97 = vld [vmem:[#allocation2 + $0x288] sm:$0xff]
    %v98 = vld [vmem:[#allocation2 + $0x320] sm:$0xff]
    %v99 = vld [vmem:[#allocation2 + $0x328] sm:$0xff]
    %vm100 = vcmask 392192
    %v102 = vsel %vm100, %v87, 0
    %104 = vmatprep.subr.mxu0 0.0
    %105 = vmatpush1.msra.mxu0 0.0
    %106 = vmatprep.subr.mxu0 0.0
    %107 = vmatpush1.msra.mxu0 0.0
    %108 = vmatprep.subr.mxu0 0.0
    %109 = vmatpush1.msra.mxu0 0.0
    %110 = vmatprep.subr.mxu0 0.0
    %111 = vmatpush1.msra.mxu0 0.0
    %112 = vmatprep.subr.mxu0 0.0
    %113 = vmatpush1.msra.mxu0 0.0
    %114 = vmatprep.subr.mxu0 0.0
    %115 = vmatpush1.msra.mxu0 0.0
    %116 = vmatprep.subr.mxu0 0.0
    %117 = vmatpush1.msra.mxu0 0.0
    %118 = vmatprep.subr.mxu0 0.0
    %119 = vmatpush1.msra.mxu0 0.0
    %120 = vmatprep.subr.mxu0 0.0
    %121 = vmatpush1.msra.mxu0 0.0
    %122 = vmatprep.subr.mxu0 0.0
    %123 = vmatpush1.msra.mxu0 0.0
    %124 = vmatprep.subr.mxu0 %v99
    %125 = vmatpush1.msra.mxu0 %v98
    %126 = vmatprep.subr.mxu0 %v97
    %127 = vmatpush1.msra.mxu0 %v96
    %128 = vmatprep.subr.mxu0 %v95
    %129 = vmatpush1.msra.mxu0 %v94
    %130 = vmatprep.subr.mxu0 %v93
    %131 = vmatpush1.msra.mxu0 %v92
    %132 = vmatprep.subr.mxu0 %v91
    %133 = vmatpush1.msra.mxu0 %v90
    %134 = vmatprep.subr.mxu0 %v89
    %135 = vmatpush1.msra.mxu0 %v88
    %136 = vmatprep.subr.mxu0 0.0
    %137 = vmatpush2.msra.mxu0 0.0
    %138 = vmatprep.subr.mxu0 0.0
    %139 = vmatpush2.msra.mxu0 0.0
    %140 = vmatprep.subr.mxu0 0.0
    %141 = vmatpush2.msra.mxu0 0.0
    %142 = vmatprep.subr.mxu0 0.0
    %143 = vmatpush2.msra.mxu0 0.0
    %144 = vmatprep.subr.mxu0 0.0
    %145 = vmatpush2.msra.mxu0 0.0
    %146 = vmatprep.subr.mxu0 0.0
    %147 = vmatpush2.msra.mxu0 0.0
    %148 = vmatprep.subr.mxu0 0.0
    %149 = vmatpush2.msra.mxu0 0.0
    %150 = vmatprep.subr.mxu0 0.0
    %151 = vmatpush2.msra.mxu0 0.0
    %152 = vmatprep.subr.mxu0 0.0
    %153 = vmatpush2.msra.mxu0 0.0
    %154 = vmatprep.subr.mxu0 0.0
    %155 = vmatpush2.msra.mxu0 0.0
    %156 = vmatprep.subr.mxu0 0.0
    %157 = vmatpush2.msra.mxu0 0.0
    %158 = vmatprep.subr.mxu0 0.0
    %159 = vmatpush2.msra.mxu0 0.0
    %160 = vmatprep.subr.mxu0 0.0
    %161 = vmatpush2.msra.mxu0 0.0
    %162 = vmatprep.subr.mxu0 0.0
    %163 = vmatpush2.msra.mxu0 0.0
    %164 = vmatprep.subr.mxu0 0.0
    %165 = vmatpush2.msra.mxu0 0.0
    %166 = vmatprep.subr.mxu0 0.0
    %167 = vmatpush2.msra.mxu0 0.0
    %168 = vmatprep.mubr.f32.mxu0 0.0
    %169 = vmatmul.mubr.f32.gmra.mxu0 %v102
    %v170 = vpop.f32.mrf.mxu0
    %v171 = vadd.f32 0.0, %v170
    %v172 = vpop.f32.mrf.mxu0
    %v173 = vadd.f32 0.0, %v172
    %174 = vdwg.mxu0
    %v175 = vmax.f32 %v171, 0.0
    %v176 = vmax.f32 %v173, 0.0
    %v177 = vld [vmem:[#allocation4] sm:$0xff]
    %v178 = vld [vmem:[#allocation4 + $0x8] sm:$0xff]
    %v179 = vld [vmem:[#allocation4 + $0x10] sm:$0xff]
    %v180 = vld [vmem:[#allocation4 + $0x18] sm:$0xff]
    %v181 = vld [vmem:[#allocation4 + $0x20] sm:$0xff]
    %v182 = vld [vmem:[#allocation4 + $0x28] sm:$0xff]
    %v183 = vld [vmem:[#allocation4 + $0x30] sm:$0xff]
    %v184 = vld [vmem:[#allocation4 + $0x38] sm:$0xff]
    %v185 = vld [vmem:[#allocation4 + $0x40] sm:$0xff]
    %v186 = vld [vmem:[#allocation4 + $0x48] sm:$0xff]
    %v187 = vld [vmem:[#allocation4 + $0x50] sm:$0xff]
    %v188 = vld [vmem:[#allocation4 + $0x58] sm:$0xff]
    %v189 = vld [vmem:[#allocation4 + $0x60] sm:$0xff]
    %v190 = vld [vmem:[#allocation4 + $0x68] sm:$0xff]
    %v191 = vld [vmem:[#allocation4 + $0x70] sm:$0xff]
    %v192 = vld [vmem:[#allocation4 + $0x78] sm:$0xff]
    %v193 = vld [vmem:[#allocation4 + $0x80] sm:$0xff]
    %v194 = vld [vmem:[#allocation4 + $0x88] sm:$0xff]
    %v195 = vld [vmem:[#allocation4 + $0x90] sm:$0xff]
    %v196 = vld [vmem:[#allocation4 + $0x98] sm:$0xff]
    %v197 = vld [vmem:[#allocation4 + $0xa0] sm:$0xff]
    %v198 = vld [vmem:[#allocation4 + $0xa8] sm:$0xff]
    %v199 = vld [vmem:[#allocation4 + $0xb0] sm:$0xff]
    %v200 = vld [vmem:[#allocation4 + $0xb8] sm:$0xff]
    %v201 = vld [vmem:[#allocation4 + $0xc0] sm:$0xff]
    %v202 = vld [vmem:[#allocation4 + $0xc8] sm:$0xff]
    %v203 = vld [vmem:[#allocation4 + $0xd0] sm:$0xff]
    %v204 = vld [vmem:[#allocation4 + $0xd8] sm:$0xff]
    %v205 = vld [vmem:[#allocation4 + $0xe0] sm:$0xff]
    %v206 = vld [vmem:[#allocation4 + $0xe8] sm:$0xff]
    %v207 = vld [vmem:[#allocation4 + $0xf0] sm:$0xff]
    %v208 = vld [vmem:[#allocation4 + $0xf8] sm:$0xff]
    %s209 = scalar_lea.vmem [#allocation2], 16
    %v210 = vld [vmem:[%s209] sm:$0xff]
    %v211 = vld [vmem:[%s209 + $0x8] sm:$0xff]
    %v212 = vld [vmem:[%s209 + $0xa0] sm:$0xff]
    %v213 = vld [vmem:[%s209 + $0xa8] sm:$0xff]
    %v214 = vld [vmem:[%s209 + $0x140] sm:$0xff]
    %v215 = vld [vmem:[%s209 + $0x148] sm:$0xff]
    %v216 = vld [vmem:[%s209 + $0x1e0] sm:$0xff]
    %v217 = vld [vmem:[%s209 + $0x1e8] sm:$0xff]
    %v218 = vld [vmem:[%s209 + $0x280] sm:$0xff]
    %v219 = vld [vmem:[%s209 + $0x288] sm:$0xff]
    %v220 = vld [vmem:[%s209 + $0x320] sm:$0xff]
    %v221 = vld [vmem:[%s209 + $0x328] sm:$0xff]
    %222 = vmatprep.subr.mxu0 0.0
    %223 = vmatpush1.msra.mxu0 0.0
    %224 = vmatprep.subr.mxu0 0.0
    %225 = vmatpush1.msra.mxu0 0.0
    %226 = vmatprep.subr.mxu0 0.0
    %227 = vmatpush1.msra.mxu0 0.0
    %228 = vmatprep.subr.mxu0 0.0
    %229 = vmatpush1.msra.mxu0 0.0
    %230 = vmatprep.subr.mxu0 0.0
    %231 = vmatpush1.msra.mxu0 0.0
    %232 = vmatprep.subr.mxu0 0.0
    %233 = vmatpush1.msra.mxu0 0.0
    %234 = vmatprep.subr.mxu0 0.0
    %235 = vmatpush1.msra.mxu0 0.0
    %236 = vmatprep.subr.mxu0 0.0
    %237 = vmatpush1.msra.mxu0 0.0
    %238 = vmatprep.subr.mxu0 0.0
    %239 = vmatpush1.msra.mxu0 0.0
    %240 = vmatprep.subr.mxu0 0.0
    %241 = vmatpush1.msra.mxu0 0.0
    %242 = vmatprep.subr.mxu0 %v221
    %243 = vmatpush1.msra.mxu0 %v220
    %244 = vmatprep.subr.mxu0 %v219
    %245 = vmatpush1.msra.mxu0 %v218
    %246 = vmatprep.subr.mxu0 %v217
    %247 = vmatpush1.msra.mxu0 %v216
    %248 = vmatprep.subr.mxu0 %v215
    %249 = vmatpush1.msra.mxu0 %v214
    %250 = vmatprep.subr.mxu0 %v213
    %251 = vmatpush1.msra.mxu0 %v212
    %252 = vmatprep.subr.mxu0 %v211
    %253 = vmatpush1.msra.mxu0 %v210
    %254 = vmatprep.subr.mxu0 0.0
    %255 = vmatpush2.msra.mxu0 0.0
    %256 = vmatprep.subr.mxu0 0.0
    %257 = vmatpush2.msra.mxu0 0.0
    %258 = vmatprep.subr.mxu0 0.0
    %259 = vmatpush2.msra.mxu0 0.0
    %260 = vmatprep.subr.mxu0 0.0
    %261 = vmatpush2.msra.mxu0 0.0
    %262 = vmatprep.subr.mxu0 0.0
    %263 = vmatpush2.msra.mxu0 0.0
    %264 = vmatprep.subr.mxu0 0.0
    %265 = vmatpush2.msra.mxu0 0.0
    %266 = vmatprep.subr.mxu0 0.0
    %267 = vmatpush2.msra.mxu0 0.0
    %268 = vmatprep.subr.mxu0 0.0
    %269 = vmatpush2.msra.mxu0 0.0
    %270 = vmatprep.subr.mxu0 0.0
    %271 = vmatpush2.msra.mxu0 0.0
    %272 = vmatprep.subr.mxu0 0.0
    %273 = vmatpush2.msra.mxu0 0.0
    %274 = vmatprep.subr.mxu0 0.0
    %275 = vmatpush2.msra.mxu0 0.0
    %276 = vmatprep.subr.mxu0 0.0
    %277 = vmatpush2.msra.mxu0 0.0
    %278 = vmatprep.subr.mxu0 0.0
    %279 = vmatpush2.msra.mxu0 0.0
    %280 = vmatprep.subr.mxu0 0.0
    %281 = vmatpush2.msra.mxu0 0.0
    %282 = vmatprep.subr.mxu0 0.0
    %283 = vmatpush2.msra.mxu0 0.0
    %284 = vmatprep.subr.mxu0 0.0
    %285 = vmatpush2.msra.mxu0 0.0
    %286 = vmatprep.mubr.f32.mxu0 0.0
    %287 = vmatmul.mubr.f32.gmra.mxu0 %v102
    %v288 = vpop.f32.mrf.mxu0
    %v289 = vadd.f32 0.0, %v288
    %v290 = vpop.f32.mrf.mxu0
    %v291 = vadd.f32 0.0, %v290
    %292 = vdwg.mxu0
    %v293 = vmax.f32 %v289, 0.0
    %v294 = vmax.f32 %v291, 0.0
    %s295 = scalar_lea.vmem [#allocation4], 256
    %v296 = vld [vmem:[%s295] sm:$0xff]
    %v297 = vld [vmem:[%s295 + $0x8] sm:$0xff]
    %v298 = vld [vmem:[%s295 + $0x10] sm:$0xff]
    %v299 = vld [vmem:[%s295 + $0x18] sm:$0xff]
    %v300 = vld [vmem:[%s295 + $0x20] sm:$0xff]
    %v301 = vld [vmem:[%s295 + $0x28] sm:$0xff]
    %v302 = vld [vmem:[%s295 + $0x30] sm:$0xff]
    %v303 = vld [vmem:[%s295 + $0x38] sm:$0xff]
    %v304 = vld [vmem:[%s295 + $0x40] sm:$0xff]
    %v305 = vld [vmem:[%s295 + $0x48] sm:$0xff]
    %v306 = vld [vmem:[%s295 + $0x50] sm:$0xff]
    %v307 = vld [vmem:[%s295 + $0x58] sm:$0xff]
    %v308 = vld [vmem:[%s295 + $0x60] sm:$0xff]
    %v309 = vld [vmem:[%s295 + $0x68] sm:$0xff]
    %v310 = vld [vmem:[%s295 + $0x70] sm:$0xff]
    %v311 = vld [vmem:[%s295 + $0x78] sm:$0xff]
    %v312 = vld [vmem:[%s295 + $0x80] sm:$0xff]
    %v313 = vld [vmem:[%s295 + $0x88] sm:$0xff]
    %v314 = vld [vmem:[%s295 + $0x90] sm:$0xff]
    %v315 = vld [vmem:[%s295 + $0x98] sm:$0xff]
    %v316 = vld [vmem:[%s295 + $0xa0] sm:$0xff]
    %v317 = vld [vmem:[%s295 + $0xa8] sm:$0xff]
    %v318 = vld [vmem:[%s295 + $0xb0] sm:$0xff]
    %v319 = vld [vmem:[%s295 + $0xb8] sm:$0xff]
    %v320 = vld [vmem:[%s295 + $0xc0] sm:$0xff]
    %v321 = vld [vmem:[%s295 + $0xc8] sm:$0xff]
    %v322 = vld [vmem:[%s295 + $0xd0] sm:$0xff]
    %v323 = vld [vmem:[%s295 + $0xd8] sm:$0xff]
    %v324 = vld [vmem:[%s295 + $0xe0] sm:$0xff]
    %v325 = vld [vmem:[%s295 + $0xe8] sm:$0xff]
    %v326 = vld [vmem:[%s295 + $0xf0] sm:$0xff]
    %v327 = vld [vmem:[%s295 + $0xf8] sm:$0xff]
    %328 = vmatprep.subr.mxu0 0.0
    %329 = vmatpush1.msra.mxu0 %v311
    %330 = vmatprep.subr.mxu0 0.0
    %331 = vmatpush1.msra.mxu0 %v310
    %332 = vmatprep.subr.mxu0 0.0
    %333 = vmatpush1.msra.mxu0 %v309
    %334 = vmatprep.subr.mxu0 0.0
    %335 = vmatpush1.msra.mxu0 %v308
    %336 = vmatprep.subr.mxu0 0.0
    %337 = vmatpush1.msra.mxu0 %v307
    %338 = vmatprep.subr.mxu0 0.0
    %339 = vmatpush1.msra.mxu0 %v306
    %340 = vmatprep.subr.mxu0 0.0
    %341 = vmatpush1.msra.mxu0 %v305
    %342 = vmatprep.subr.mxu0 0.0
    %343 = vmatpush1.msra.mxu0 %v304
    %344 = vmatprep.subr.mxu0 0.0
    %345 = vmatpush1.msra.mxu0 %v303
    %346 = vmatprep.subr.mxu0 0.0
    %347 = vmatpush1.msra.mxu0 %v302
    %348 = vmatprep.subr.mxu0 0.0
    %349 = vmatpush1.msra.mxu0 %v301
    %350 = vmatprep.subr.mxu0 0.0
    %351 = vmatpush1.msra.mxu0 %v300
    %352 = vmatprep.subr.mxu0 0.0
    %353 = vmatpush1.msra.mxu0 %v299
    %354 = vmatprep.subr.mxu0 0.0
    %355 = vmatpush1.msra.mxu0 %v298
    %356 = vmatprep.subr.mxu0 0.0
    %357 = vmatpush1.msra.mxu0 %v297
    %358 = vmatprep.subr.mxu0 0.0
    %359 = vmatpush1.msra.mxu0 %v296
    %360 = vmatprep.subr.mxu0 0.0
    %361 = vmatpush2.msra.mxu0 %v327
    %362 = vmatprep.subr.mxu0 0.0
    %363 = vmatpush2.msra.mxu0 %v326
    %364 = vmatprep.subr.mxu0 0.0
    %365 = vmatpush2.msra.mxu0 %v325
    %366 = vmatprep.subr.mxu0 0.0
    %367 = vmatpush2.msra.mxu0 %v324
    %368 = vmatprep.subr.mxu0 0.0
    %369 = vmatpush2.msra.mxu0 %v323
    %370 = vmatprep.subr.mxu0 0.0
    %371 = vmatpush2.msra.mxu0 %v322
    %372 = vmatprep.subr.mxu0 0.0
    %373 = vmatpush2.msra.mxu0 %v321
    %374 = vmatprep.subr.mxu0 0.0
    %375 = vmatpush2.msra.mxu0 %v320
    %376 = vmatprep.subr.mxu0 0.0
    %377 = vmatpush2.msra.mxu0 %v319
    %378 = vmatprep.subr.mxu0 0.0
    %379 = vmatpush2.msra.mxu0 %v318
    %380 = vmatprep.subr.mxu0 0.0
    %381 = vmatpush2.msra.mxu0 %v317
    %382 = vmatprep.subr.mxu0 0.0
    %383 = vmatpush2.msra.mxu0 %v316
    %384 = vmatprep.subr.mxu0 0.0
    %385 = vmatpush2.msra.mxu0 %v315
    %386 = vmatprep.subr.mxu0 0.0
    %387 = vmatpush2.msra.mxu0 %v314
    %388 = vmatprep.subr.mxu0 0.0
    %389 = vmatpush2.msra.mxu0 %v313
    %390 = vmatprep.subr.mxu0 0.0
    %391 = vmatpush2.msra.mxu0 %v312
    %392 = vmatprep.mubr.f32.mxu0 %v294
    %393 = vmatmul.mubr.f32.gmra.mxu0 %v293
    %v394 = vpop.f32.mrf.mxu0
    %v395 = vadd.f32 0.0, %v394
    %v396 = vpop.f32.mrf.mxu0
    %397 = vdwg.mxu0
    %398 = vmatprep.subr.mxu0 0.0
    %399 = vmatpush1.msra.mxu0 %v192
    %400 = vmatprep.subr.mxu0 0.0
    %401 = vmatpush1.msra.mxu0 %v191
    %402 = vmatprep.subr.mxu0 0.0
    %403 = vmatpush1.msra.mxu0 %v190
    %404 = vmatprep.subr.mxu0 0.0
    %405 = vmatpush1.msra.mxu0 %v189
    %406 = vmatprep.subr.mxu0 0.0
    %407 = vmatpush1.msra.mxu0 %v188
    %408 = vmatprep.subr.mxu0 0.0
    %409 = vmatpush1.msra.mxu0 %v187
    %410 = vmatprep.subr.mxu0 0.0
    %411 = vmatpush1.msra.mxu0 %v186
    %412 = vmatprep.subr.mxu0 0.0
    %413 = vmatpush1.msra.mxu0 %v185
    %414 = vmatprep.subr.mxu0 0.0
    %415 = vmatpush1.msra.mxu0 %v184
    %416 = vmatprep.subr.mxu0 0.0
    %417 = vmatpush1.msra.mxu0 %v183
    %418 = vmatprep.subr.mxu0 0.0
    %419 = vmatpush1.msra.mxu0 %v182
    %420 = vmatprep.subr.mxu0 0.0
    %421 = vmatpush1.msra.mxu0 %v181
    %422 = vmatprep.subr.mxu0 0.0
    %423 = vmatpush1.msra.mxu0 %v180
    %424 = vmatprep.subr.mxu0 0.0
    %425 = vmatpush1.msra.mxu0 %v179
    %426 = vmatprep.subr.mxu0 0.0
    %427 = vmatpush1.msra.mxu0 %v178
    %428 = vmatprep.subr.mxu0 0.0
    %429 = vmatpush1.msra.mxu0 %v177
    %430 = vmatprep.subr.mxu0 0.0
    %431 = vmatpush2.msra.mxu0 %v208
    %432 = vmatprep.subr.mxu0 0.0
    %433 = vmatpush2.msra.mxu0 %v207
    %434 = vmatprep.subr.mxu0 0.0
    %435 = vmatpush2.msra.mxu0 %v206
    %436 = vmatprep.subr.mxu0 0.0
    %437 = vmatpush2.msra.mxu0 %v205
    %438 = vmatprep.subr.mxu0 0.0
    %439 = vmatpush2.msra.mxu0 %v204
    %440 = vmatprep.subr.mxu0 0.0
    %441 = vmatpush2.msra.mxu0 %v203
    %442 = vmatprep.subr.mxu0 0.0
    %443 = vmatpush2.msra.mxu0 %v202
    %444 = vmatprep.subr.mxu0 0.0
    %445 = vmatpush2.msra.mxu0 %v201
    %446 = vmatprep.subr.mxu0 0.0
    %447 = vmatpush2.msra.mxu0 %v200
    %448 = vmatprep.subr.mxu0 0.0
    %449 = vmatpush2.msra.mxu0 %v199
    %450 = vmatprep.subr.mxu0 0.0
    %451 = vmatpush2.msra.mxu0 %v198
    %452 = vmatprep.subr.mxu0 0.0
    %453 = vmatpush2.msra.mxu0 %v197
    %454 = vmatprep.subr.mxu0 0.0
    %455 = vmatpush2.msra.mxu0 %v196
    %456 = vmatprep.subr.mxu0 0.0
    %457 = vmatpush2.msra.mxu0 %v195
    %458 = vmatprep.subr.mxu0 0.0
    %459 = vmatpush2.msra.mxu0 %v194
    %460 = vmatprep.subr.mxu0 0.0
    %461 = vmatpush2.msra.mxu0 %v193
    %462 = vmatprep.mubr.f32.mxu0 %v176
    %463 = vmatmul.mubr.f32.gmra.mxu0 %v175
    %v464 = vpop.f32.mrf.mxu0
    %v465 = vadd.f32 %v395, %v464
    %v466 = vpop.f32.mrf.mxu0
    %467 = vdwg.mxu0
    %s468 = scalar_lea.vmem [#allocation2], 32
    %v469 = vld [vmem:[%s468] sm:$0xff]
    %v470 = vld [vmem:[%s468 + $0x8] sm:$0xff]
    %v471 = vld [vmem:[%s468 + $0xa0] sm:$0xff]
    %v472 = vld [vmem:[%s468 + $0xa8] sm:$0xff]
    %v473 = vld [vmem:[%s468 + $0x140] sm:$0xff]
    %v474 = vld [vmem:[%s468 + $0x148] sm:$0xff]
    %v475 = vld [vmem:[%s468 + $0x1e0] sm:$0xff]
    %v476 = vld [vmem:[%s468 + $0x1e8] sm:$0xff]
    %v477 = vld [vmem:[%s468 + $0x280] sm:$0xff]
    %v478 = vld [vmem:[%s468 + $0x288] sm:$0xff]
    %v479 = vld [vmem:[%s468 + $0x320] sm:$0xff]
    %v480 = vld [vmem:[%s468 + $0x328] sm:$0xff]
    %481 = vmatprep.subr.mxu0 0.0
    %482 = vmatpush1.msra.mxu0 0.0
    %483 = vmatprep.subr.mxu0 0.0
    %484 = vmatpush1.msra.mxu0 0.0
    %485 = vmatprep.subr.mxu0 0.0
    %486 = vmatpush1.msra.mxu0 0.0
    %487 = vmatprep.subr.mxu0 0.0
    %488 = vmatpush1.msra.mxu0 0.0
    %489 = vmatprep.subr.mxu0 0.0
    %490 = vmatpush1.msra.mxu0 0.0
    %491 = vmatprep.subr.mxu0 0.0
    %492 = vmatpush1.msra.mxu0 0.0
    %493 = vmatprep.subr.mxu0 0.0
    %494 = vmatpush1.msra.mxu0 0.0
    %495 = vmatprep.subr.mxu0 0.0
    %496 = vmatpush1.msra.mxu0 0.0
    %497 = vmatprep.subr.mxu0 0.0
    %498 = vmatpush1.msra.mxu0 0.0
    %499 = vmatprep.subr.mxu0 0.0
    %500 = vmatpush1.msra.mxu0 0.0
    %501 = vmatprep.subr.mxu0 %v480
    %502 = vmatpush1.msra.mxu0 %v479
    %503 = vmatprep.subr.mxu0 %v478
    %504 = vmatpush1.msra.mxu0 %v477
    %505 = vmatprep.subr.mxu0 %v476
    %506 = vmatpush1.msra.mxu0 %v475
    %507 = vmatprep.subr.mxu0 %v474
    %508 = vmatpush1.msra.mxu0 %v473
    %509 = vmatprep.subr.mxu0 %v472
    %510 = vmatpush1.msra.mxu0 %v471
    %511 = vmatprep.subr.mxu0 %v470
    %512 = vmatpush1.msra.mxu0 %v469
    %513 = vmatprep.subr.mxu0 0.0
    %514 = vmatpush2.msra.mxu0 0.0
    %515 = vmatprep.subr.mxu0 0.0
    %516 = vmatpush2.msra.mxu0 0.0
    %517 = vmatprep.subr.mxu0 0.0
    %518 = vmatpush2.msra.mxu0 0.0
    %519 = vmatprep.subr.mxu0 0.0
    %520 = vmatpush2.msra.mxu0 0.0
    %521 = vmatprep.subr.mxu0 0.0
    %522 = vmatpush2.msra.mxu0 0.0
    %523 = vmatprep.subr.mxu0 0.0
    %524 = vmatpush2.msra.mxu0 0.0
    %525 = vmatprep.subr.mxu0 0.0
    %526 = vmatpush2.msra.mxu0 0.0
    %527 = vmatprep.subr.mxu0 0.0
    %528 = vmatpush2.msra.mxu0 0.0
    %529 = vmatprep.subr.mxu0 0.0
    %530 = vmatpush2.msra.mxu0 0.0
    %531 = vmatprep.subr.mxu0 0.0
    %532 = vmatpush2.msra.mxu0 0.0
    %533 = vmatprep.subr.mxu0 0.0
    %534 = vmatpush2.msra.mxu0 0.0
    %535 = vmatprep.subr.mxu0 0.0
    %536 = vmatpush2.msra.mxu0 0.0
    %537 = vmatprep.subr.mxu0 0.0
    %538 = vmatpush2.msra.mxu0 0.0
    %539 = vmatprep.subr.mxu0 0.0
    %540 = vmatpush2.msra.mxu0 0.0
    %541 = vmatprep.subr.mxu0 0.0
    %542 = vmatpush2.msra.mxu0 0.0
    %543 = vmatprep.subr.mxu0 0.0
    %544 = vmatpush2.msra.mxu0 0.0
    %545 = vmatprep.mubr.f32.mxu0 0.0
    %546 = vmatmul.mubr.f32.gmra.mxu0 %v102
    %v547 = vpop.f32.mrf.mxu0
    %v548 = vadd.f32 0.0, %v547
    %v549 = vpop.f32.mrf.mxu0
    %v550 = vadd.f32 0.0, %v549
    %551 = vdwg.mxu0
    %v552 = vmax.f32 %v548, 0.0
    %v553 = vmax.f32 %v550, 0.0
    %s554 = scalar_lea.vmem [#allocation4], 512
    %v555 = vld [vmem:[%s554] sm:$0xff]
    %v556 = vld [vmem:[%s554 + $0x8] sm:$0xff]
    %v557 = vld [vmem:[%s554 + $0x10] sm:$0xff]
    %v558 = vld [vmem:[%s554 + $0x18] sm:$0xff]
    %v559 = vld [vmem:[%s554 + $0x20] sm:$0xff]
    %v560 = vld [vmem:[%s554 + $0x28] sm:$0xff]
    %v561 = vld [vmem:[%s554 + $0x30] sm:$0xff]
    %v562 = vld [vmem:[%s554 + $0x38] sm:$0xff]
    %v563 = vld [vmem:[%s554 + $0x40] sm:$0xff]
    %v564 = vld [vmem:[%s554 + $0x48] sm:$0xff]
    %v565 = vld [vmem:[%s554 + $0x50] sm:$0xff]
    %v566 = vld [vmem:[%s554 + $0x58] sm:$0xff]
    %v567 = vld [vmem:[%s554 + $0x60] sm:$0xff]
    %v568 = vld [vmem:[%s554 + $0x68] sm:$0xff]
    %v569 = vld [vmem:[%s554 + $0x70] sm:$0xff]
    %v570 = vld [vmem:[%s554 + $0x78] sm:$0xff]
    %v571 = vld [vmem:[%s554 + $0x80] sm:$0xff]
    %v572 = vld [vmem:[%s554 + $0x88] sm:$0xff]
    %v573 = vld [vmem:[%s554 + $0x90] sm:$0xff]
    %v574 = vld [vmem:[%s554 + $0x98] sm:$0xff]
    %v575 = vld [vmem:[%s554 + $0xa0] sm:$0xff]
    %v576 = vld [vmem:[%s554 + $0xa8] sm:$0xff]
    %v577 = vld [vmem:[%s554 + $0xb0] sm:$0xff]
    %v578 = vld [vmem:[%s554 + $0xb8] sm:$0xff]
    %v579 = vld [vmem:[%s554 + $0xc0] sm:$0xff]
    %v580 = vld [vmem:[%s554 + $0xc8] sm:$0xff]
    %v581 = vld [vmem:[%s554 + $0xd0] sm:$0xff]
    %v582 = vld [vmem:[%s554 + $0xd8] sm:$0xff]
    %v583 = vld [vmem:[%s554 + $0xe0] sm:$0xff]
    %v584 = vld [vmem:[%s554 + $0xe8] sm:$0xff]
    %v585 = vld [vmem:[%s554 + $0xf0] sm:$0xff]
    %v586 = vld [vmem:[%s554 + $0xf8] sm:$0xff]
    %587 = vmatprep.subr.mxu0 0.0
    %588 = vmatpush1.msra.mxu0 %v570
    %589 = vmatprep.subr.mxu0 0.0
    %590 = vmatpush1.msra.mxu0 %v569
    %591 = vmatprep.subr.mxu0 0.0
    %592 = vmatpush1.msra.mxu0 %v568
    %593 = vmatprep.subr.mxu0 0.0
    %594 = vmatpush1.msra.mxu0 %v567
    %595 = vmatprep.subr.mxu0 0.0
    %596 = vmatpush1.msra.mxu0 %v566
    %597 = vmatprep.subr.mxu0 0.0
    %598 = vmatpush1.msra.mxu0 %v565
    %599 = vmatprep.subr.mxu0 0.0
    %600 = vmatpush1.msra.mxu0 %v564
    %601 = vmatprep.subr.mxu0 0.0
    %602 = vmatpush1.msra.mxu0 %v563
    %603 = vmatprep.subr.mxu0 0.0
    %604 = vmatpush1.msra.mxu0 %v562
    %605 = vmatprep.subr.mxu0 0.0
    %606 = vmatpush1.msra.mxu0 %v561
    %607 = vmatprep.subr.mxu0 0.0
    %608 = vmatpush1.msra.mxu0 %v560
    %609 = vmatprep.subr.mxu0 0.0
    %610 = vmatpush1.msra.mxu0 %v559
    %611 = vmatprep.subr.mxu0 0.0
    %612 = vmatpush1.msra.mxu0 %v558
    %613 = vmatprep.subr.mxu0 0.0
    %614 = vmatpush1.msra.mxu0 %v557
    %615 = vmatprep.subr.mxu0 0.0
    %616 = vmatpush1.msra.mxu0 %v556
    %617 = vmatprep.subr.mxu0 0.0
    %618 = vmatpush1.msra.mxu0 %v555
    %619 = vmatprep.subr.mxu0 0.0
    %620 = vmatpush2.msra.mxu0 %v586
    %621 = vmatprep.subr.mxu0 0.0
    %622 = vmatpush2.msra.mxu0 %v585
    %623 = vmatprep.subr.mxu0 0.0
    %624 = vmatpush2.msra.mxu0 %v584
    %625 = vmatprep.subr.mxu0 0.0
    %626 = vmatpush2.msra.mxu0 %v583
    %627 = vmatprep.subr.mxu0 0.0
    %628 = vmatpush2.msra.mxu0 %v582
    %629 = vmatprep.subr.mxu0 0.0
    %630 = vmatpush2.msra.mxu0 %v581
    %631 = vmatprep.subr.mxu0 0.0
    %632 = vmatpush2.msra.mxu0 %v580
    %633 = vmatprep.subr.mxu0 0.0
    %634 = vmatpush2.msra.mxu0 %v579
    %635 = vmatprep.subr.mxu0 0.0
    %636 = vmatpush2.msra.mxu0 %v578
    %637 = vmatprep.subr.mxu0 0.0
    %638 = vmatpush2.msra.mxu0 %v577
    %639 = vmatprep.subr.mxu0 0.0
    %640 = vmatpush2.msra.mxu0 %v576
    %641 = vmatprep.subr.mxu0 0.0
    %642 = vmatpush2.msra.mxu0 %v575
    %643 = vmatprep.subr.mxu0 0.0
    %644 = vmatpush2.msra.mxu0 %v574
    %645 = vmatprep.subr.mxu0 0.0
    %646 = vmatpush2.msra.mxu0 %v573
    %647 = vmatprep.subr.mxu0 0.0
    %648 = vmatpush2.msra.mxu0 %v572
    %649 = vmatprep.subr.mxu0 0.0
    %650 = vmatpush2.msra.mxu0 %v571
    %651 = vmatprep.mubr.f32.mxu0 %v553
    %652 = vmatmul.mubr.f32.gmra.mxu0 %v552
    %v653 = vpop.f32.mrf.mxu0
    %v654 = vadd.f32 0.0, %v653
    %v655 = vpop.f32.mrf.mxu0
    %656 = vdwg.mxu0
    %v657 = vadd.f32 %v465, %v654
    %s658 = scalar_lea.vmem [#allocation2], 48
    %v659 = vld [vmem:[%s658] sm:$0xff]
    %v660 = vld [vmem:[%s658 + $0x8] sm:$0xff]
    %v661 = vld [vmem:[%s658 + $0xa0] sm:$0xff]
    %v662 = vld [vmem:[%s658 + $0xa8] sm:$0xff]
    %v663 = vld [vmem:[%s658 + $0x140] sm:$0xff]
    %v664 = vld [vmem:[%s658 + $0x148] sm:$0xff]
    %v665 = vld [vmem:[%s658 + $0x1e0] sm:$0xff]
    %v666 = vld [vmem:[%s658 + $0x1e8] sm:$0xff]
    %v667 = vld [vmem:[%s658 + $0x280] sm:$0xff]
    %v668 = vld [vmem:[%s658 + $0x288] sm:$0xff]
    %v669 = vld [vmem:[%s658 + $0x320] sm:$0xff]
    %v670 = vld [vmem:[%s658 + $0x328] sm:$0xff]
    %671 = vmatprep.subr.mxu0 0.0
    %672 = vmatpush1.msra.mxu0 0.0
    %673 = vmatprep.subr.mxu0 0.0
    %674 = vmatpush1.msra.mxu0 0.0
    %675 = vmatprep.subr.mxu0 0.0
    %676 = vmatpush1.msra.mxu0 0.0
    %677 = vmatprep.subr.mxu0 0.0
    %678 = vmatpush1.msra.mxu0 0.0
    %679 = vmatprep.subr.mxu0 0.0
    %680 = vmatpush1.msra.mxu0 0.0
    %681 = vmatprep.subr.mxu0 0.0
    %682 = vmatpush1.msra.mxu0 0.0
    %683 = vmatprep.subr.mxu0 0.0
    %684 = vmatpush1.msra.mxu0 0.0
    %685 = vmatprep.subr.mxu0 0.0
    %686 = vmatpush1.msra.mxu0 0.0
    %687 = vmatprep.subr.mxu0 0.0
    %688 = vmatpush1.msra.mxu0 0.0
    %689 = vmatprep.subr.mxu0 0.0
    %690 = vmatpush1.msra.mxu0 0.0
    %691 = vmatprep.subr.mxu0 %v670
    %692 = vmatpush1.msra.mxu0 %v669
    %693 = vmatprep.subr.mxu0 %v668
    %694 = vmatpush1.msra.mxu0 %v667
    %695 = vmatprep.subr.mxu0 %v666
    %696 = vmatpush1.msra.mxu0 %v665
    %697 = vmatprep.subr.mxu0 %v664
    %698 = vmatpush1.msra.mxu0 %v663
    %699 = vmatprep.subr.mxu0 %v662
    %700 = vmatpush1.msra.mxu0 %v661
    %701 = vmatprep.subr.mxu0 %v660
    %702 = vmatpush1.msra.mxu0 %v659
    %703 = vmatprep.subr.mxu0 0.0
    %704 = vmatpush2.msra.mxu0 0.0
    %705 = vmatprep.subr.mxu0 0.0
    %706 = vmatpush2.msra.mxu0 0.0
    %707 = vmatprep.subr.mxu0 0.0
    %708 = vmatpush2.msra.mxu0 0.0
    %709 = vmatprep.subr.mxu0 0.0
    %710 = vmatpush2.msra.mxu0 0.0
    %711 = vmatprep.subr.mxu0 0.0
    %712 = vmatpush2.msra.mxu0 0.0
    %713 = vmatprep.subr.mxu0 0.0
    %714 = vmatpush2.msra.mxu0 0.0
    %715 = vmatprep.subr.mxu0 0.0
    %716 = vmatpush2.msra.mxu0 0.0
    %717 = vmatprep.subr.mxu0 0.0
    %718 = vmatpush2.msra.mxu0 0.0
    %719 = vmatprep.subr.mxu0 0.0
    %720 = vmatpush2.msra.mxu0 0.0
    %721 = vmatprep.subr.mxu0 0.0
    %722 = vmatpush2.msra.mxu0 0.0
    %723 = vmatprep.subr.mxu0 0.0
    %724 = vmatpush2.msra.mxu0 0.0
    %725 = vmatprep.subr.mxu0 0.0
    %726 = vmatpush2.msra.mxu0 0.0
    %727 = vmatprep.subr.mxu0 0.0
    %728 = vmatpush2.msra.mxu0 0.0
    %729 = vmatprep.subr.mxu0 0.0
    %730 = vmatpush2.msra.mxu0 0.0
    %731 = vmatprep.subr.mxu0 0.0
    %732 = vmatpush2.msra.mxu0 0.0
    %733 = vmatprep.subr.mxu0 0.0
    %734 = vmatpush2.msra.mxu0 0.0
    %735 = vmatprep.mubr.f32.mxu0 0.0
    %736 = vmatmul.mubr.f32.gmra.mxu0 %v102
    %v737 = vpop.f32.mrf.mxu0
    %v738 = vadd.f32 0.0, %v737
    %v739 = vpop.f32.mrf.mxu0
    %v740 = vadd.f32 0.0, %v739
    %741 = vdwg.mxu0
    %v742 = vmax.f32 %v738, 0.0
    %v743 = vmax.f32 %v740, 0.0
    %s744 = scalar_lea.vmem [#allocation4], 768
    %v745 = vld [vmem:[%s744] sm:$0xff]
    %v746 = vld [vmem:[%s744 + $0x8] sm:$0xff]
    %v747 = vld [vmem:[%s744 + $0x10] sm:$0xff]
    %v748 = vld [vmem:[%s744 + $0x18] sm:$0xff]
    %v749 = vld [vmem:[%s744 + $0x20] sm:$0xff]
    %v750 = vld [vmem:[%s744 + $0x28] sm:$0xff]
    %v751 = vld [vmem:[%s744 + $0x30] sm:$0xff]
    %v752 = vld [vmem:[%s744 + $0x38] sm:$0xff]
    %v753 = vld [vmem:[%s744 + $0x40] sm:$0xff]
    %v754 = vld [vmem:[%s744 + $0x48] sm:$0xff]
    %v755 = vld [vmem:[%s744 + $0x50] sm:$0xff]
    %v756 = vld [vmem:[%s744 + $0x58] sm:$0xff]
    %v757 = vld [vmem:[%s744 + $0x60] sm:$0xff]
    %v758 = vld [vmem:[%s744 + $0x68] sm:$0xff]
    %v759 = vld [vmem:[%s744 + $0x70] sm:$0xff]
    %v760 = vld [vmem:[%s744 + $0x78] sm:$0xff]
    %v761 = vld [vmem:[%s744 + $0x80] sm:$0xff]
    %v762 = vld [vmem:[%s744 + $0x88] sm:$0xff]
    %v763 = vld [vmem:[%s744 + $0x90] sm:$0xff]
    %v764 = vld [vmem:[%s744 + $0x98] sm:$0xff]
    %v765 = vld [vmem:[%s744 + $0xa0] sm:$0xff]
    %v766 = vld [vmem:[%s744 + $0xa8] sm:$0xff]
    %v767 = vld [vmem:[%s744 + $0xb0] sm:$0xff]
    %v768 = vld [vmem:[%s744 + $0xb8] sm:$0xff]
    %v769 = vld [vmem:[%s744 + $0xc0] sm:$0xff]
    %v770 = vld [vmem:[%s744 + $0xc8] sm:$0xff]
    %v771 = vld [vmem:[%s744 + $0xd0] sm:$0xff]
    %v772 = vld [vmem:[%s744 + $0xd8] sm:$0xff]
    %v773 = vld [vmem:[%s744 + $0xe0] sm:$0xff]
    %v774 = vld [vmem:[%s744 + $0xe8] sm:$0xff]
    %v775 = vld [vmem:[%s744 + $0xf0] sm:$0xff]
    %v776 = vld [vmem:[%s744 + $0xf8] sm:$0xff]
    %777 = vmatprep.subr.mxu0 0.0
    %778 = vmatpush1.msra.mxu0 %v760
    %779 = vmatprep.subr.mxu0 0.0
    %780 = vmatpush1.msra.mxu0 %v759
    %781 = vmatprep.subr.mxu0 0.0
    %782 = vmatpush1.msra.mxu0 %v758
    %783 = vmatprep.subr.mxu0 0.0
    %784 = vmatpush1.msra.mxu0 %v757
    %785 = vmatprep.subr.mxu0 0.0
    %786 = vmatpush1.msra.mxu0 %v756
    %787 = vmatprep.subr.mxu0 0.0
    %788 = vmatpush1.msra.mxu0 %v755
    %789 = vmatprep.subr.mxu0 0.0
    %790 = vmatpush1.msra.mxu0 %v754
    %791 = vmatprep.subr.mxu0 0.0
    %792 = vmatpush1.msra.mxu0 %v753
    %793 = vmatprep.subr.mxu0 0.0
    %794 = vmatpush1.msra.mxu0 %v752
    %795 = vmatprep.subr.mxu0 0.0
    %796 = vmatpush1.msra.mxu0 %v751
    %797 = vmatprep.subr.mxu0 0.0
    %798 = vmatpush1.msra.mxu0 %v750
    %799 = vmatprep.subr.mxu0 0.0
    %800 = vmatpush1.msra.mxu0 %v749
    %801 = vmatprep.subr.mxu0 0.0
    %802 = vmatpush1.msra.mxu0 %v748
    %803 = vmatprep.subr.mxu0 0.0
    %804 = vmatpush1.msra.mxu0 %v747
    %805 = vmatprep.subr.mxu0 0.0
    %806 = vmatpush1.msra.mxu0 %v746
    %807 = vmatprep.subr.mxu0 0.0
    %808 = vmatpush1.msra.mxu0 %v745
    %809 = vmatprep.subr.mxu0 0.0
    %810 = vmatpush2.msra.mxu0 %v776
    %811 = vmatprep.subr.mxu0 0.0
    %812 = vmatpush2.msra.mxu0 %v775
    %813 = vmatprep.subr.mxu0 0.0
    %814 = vmatpush2.msra.mxu0 %v774
    %815 = vmatprep.subr.mxu0 0.0
    %816 = vmatpush2.msra.mxu0 %v773
    %817 = vmatprep.subr.mxu0 0.0
    %818 = vmatpush2.msra.mxu0 %v772
    %819 = vmatprep.subr.mxu0 0.0
    %820 = vmatpush2.msra.mxu0 %v771
    %821 = vmatprep.subr.mxu0 0.0
    %822 = vmatpush2.msra.mxu0 %v770
    %823 = vmatprep.subr.mxu0 0.0
    %824 = vmatpush2.msra.mxu0 %v769
    %825 = vmatprep.subr.mxu0 0.0
    %826 = vmatpush2.msra.mxu0 %v768
    %827 = vmatprep.subr.mxu0 0.0
    %828 = vmatpush2.msra.mxu0 %v767
    %829 = vmatprep.subr.mxu0 0.0
    %830 = vmatpush2.msra.mxu0 %v766
    %831 = vmatprep.subr.mxu0 0.0
    %832 = vmatpush2.msra.mxu0 %v765
    %833 = vmatprep.subr.mxu0 0.0
    %834 = vmatpush2.msra.mxu0 %v764
    %835 = vmatprep.subr.mxu0 0.0
    %836 = vmatpush2.msra.mxu0 %v763
    %837 = vmatprep.subr.mxu0 0.0
    %838 = vmatpush2.msra.mxu0 %v762
    %839 = vmatprep.subr.mxu0 0.0
    %840 = vmatpush2.msra.mxu0 %v761
    %841 = vmatprep.mubr.f32.mxu0 %v743
    %842 = vmatmul.mubr.f32.gmra.mxu0 %v742
    %v843 = vpop.f32.mrf.mxu0
    %v844 = vadd.f32 0.0, %v843
    %v845 = vpop.f32.mrf.mxu0
    %846 = vdwg.mxu0
    %v847 = vadd.f32 %v657, %v844
    %s848 = scalar_lea.vmem [#allocation2], 64
    %v849 = vld [vmem:[%s848] sm:$0xff]
    %v850 = vld [vmem:[%s848 + $0x8] sm:$0xff]
    %v851 = vld [vmem:[%s848 + $0xa0] sm:$0xff]
    %v852 = vld [vmem:[%s848 + $0xa8] sm:$0xff]
    %v853 = vld [vmem:[%s848 + $0x140] sm:$0xff]
    %v854 = vld [vmem:[%s848 + $0x148] sm:$0xff]
    %v855 = vld [vmem:[%s848 + $0x1e0] sm:$0xff]
    %v856 = vld [vmem:[%s848 + $0x1e8] sm:$0xff]
    %v857 = vld [vmem:[%s848 + $0x280] sm:$0xff]
    %v858 = vld [vmem:[%s848 + $0x288] sm:$0xff]
    %v859 = vld [vmem:[%s848 + $0x320] sm:$0xff]
    %v860 = vld [vmem:[%s848 + $0x328] sm:$0xff]
    %861 = vmatprep.subr.mxu0 0.0
    %862 = vmatpush1.msra.mxu0 0.0
    %863 = vmatprep.subr.mxu0 0.0
    %864 = vmatpush1.msra.mxu0 0.0
    %865 = vmatprep.subr.mxu0 0.0
    %866 = vmatpush1.msra.mxu0 0.0
    %867 = vmatprep.subr.mxu0 0.0
    %868 = vmatpush1.msra.mxu0 0.0
    %869 = vmatprep.subr.mxu0 0.0
    %870 = vmatpush1.msra.mxu0 0.0
    %871 = vmatprep.subr.mxu0 0.0
    %872 = vmatpush1.msra.mxu0 0.0
    %873 = vmatprep.subr.mxu0 0.0
    %874 = vmatpush1.msra.mxu0 0.0
    %875 = vmatprep.subr.mxu0 0.0
    %876 = vmatpush1.msra.mxu0 0.0
    %877 = vmatprep.subr.mxu0 0.0
    %878 = vmatpush1.msra.mxu0 0.0
    %879 = vmatprep.subr.mxu0 0.0
    %880 = vmatpush1.msra.mxu0 0.0
    %881 = vmatprep.subr.mxu0 %v860
    %882 = vmatpush1.msra.mxu0 %v859
    %883 = vmatprep.subr.mxu0 %v858
    %884 = vmatpush1.msra.mxu0 %v857
    %885 = vmatprep.subr.mxu0 %v856
    %886 = vmatpush1.msra.mxu0 %v855
    %887 = vmatprep.subr.mxu0 %v854
    %888 = vmatpush1.msra.mxu0 %v853
    %889 = vmatprep.subr.mxu0 %v852
    %890 = vmatpush1.msra.mxu0 %v851
    %891 = vmatprep.subr.mxu0 %v850
    %892 = vmatpush1.msra.mxu0 %v849
    %893 = vmatprep.subr.mxu0 0.0
    %894 = vmatpush2.msra.mxu0 0.0
    %895 = vmatprep.subr.mxu0 0.0
    %896 = vmatpush2.msra.mxu0 0.0
    %897 = vmatprep.subr.mxu0 0.0
    %898 = vmatpush2.msra.mxu0 0.0
    %899 = vmatprep.subr.mxu0 0.0
    %900 = vmatpush2.msra.mxu0 0.0
    %901 = vmatprep.subr.mxu0 0.0
    %902 = vmatpush2.msra.mxu0 0.0
    %903 = vmatprep.subr.mxu0 0.0
    %904 = vmatpush2.msra.mxu0 0.0
    %905 = vmatprep.subr.mxu0 0.0
    %906 = vmatpush2.msra.mxu0 0.0
    %907 = vmatprep.subr.mxu0 0.0
    %908 = vmatpush2.msra.mxu0 0.0
    %909 = vmatprep.subr.mxu0 0.0
    %910 = vmatpush2.msra.mxu0 0.0
    %911 = vmatprep.subr.mxu0 0.0
    %912 = vmatpush2.msra.mxu0 0.0
    %913 = vmatprep.subr.mxu0 0.0
    %914 = vmatpush2.msra.mxu0 0.0
    %915 = vmatprep.subr.mxu0 0.0
    %916 = vmatpush2.msra.mxu0 0.0
    %917 = vmatprep.subr.mxu0 0.0
    %918 = vmatpush2.msra.mxu0 0.0
    %919 = vmatprep.subr.mxu0 0.0
    %920 = vmatpush2.msra.mxu0 0.0
    %921 = vmatprep.subr.mxu0 0.0
    %922 = vmatpush2.msra.mxu0 0.0
    %923 = vmatprep.subr.mxu0 0.0
    %924 = vmatpush2.msra.mxu0 0.0
    %925 = vmatprep.mubr.f32.mxu0 0.0
    %926 = vmatmul.mubr.f32.gmra.mxu0 %v102
    %v927 = vpop.f32.mrf.mxu0
    %v928 = vadd.f32 0.0, %v927
    %v929 = vpop.f32.mrf.mxu0
    %v930 = vadd.f32 0.0, %v929
    %931 = vdwg.mxu0
    %v932 = vmax.f32 %v928, 0.0
    %v933 = vmax.f32 %v930, 0.0
    %s934 = scalar_lea.vmem [#allocation4], 1024
    %v935 = vld [vmem:[%s934] sm:$0xff]
    %v936 = vld [vmem:[%s934 + $0x8] sm:$0xff]
    %v937 = vld [vmem:[%s934 + $0x10] sm:$0xff]
    %v938 = vld [vmem:[%s934 + $0x18] sm:$0xff]
    %v939 = vld [vmem:[%s934 + $0x20] sm:$0xff]
    %v940 = vld [vmem:[%s934 + $0x28] sm:$0xff]
    %v941 = vld [vmem:[%s934 + $0x30] sm:$0xff]
    %v942 = vld [vmem:[%s934 + $0x38] sm:$0xff]
    %v943 = vld [vmem:[%s934 + $0x40] sm:$0xff]
    %v944 = vld [vmem:[%s934 + $0x48] sm:$0xff]
    %v945 = vld [vmem:[%s934 + $0x50] sm:$0xff]
    %v946 = vld [vmem:[%s934 + $0x58] sm:$0xff]
    %v947 = vld [vmem:[%s934 + $0x60] sm:$0xff]
    %v948 = vld [vmem:[%s934 + $0x68] sm:$0xff]
    %v949 = vld [vmem:[%s934 + $0x70] sm:$0xff]
    %v950 = vld [vmem:[%s934 + $0x78] sm:$0xff]
    %v951 = vld [vmem:[%s934 + $0x80] sm:$0xff]
    %v952 = vld [vmem:[%s934 + $0x88] sm:$0xff]
    %v953 = vld [vmem:[%s934 + $0x90] sm:$0xff]
    %v954 = vld [vmem:[%s934 + $0x98] sm:$0xff]
    %v955 = vld [vmem:[%s934 + $0xa0] sm:$0xff]
    %v956 = vld [vmem:[%s934 + $0xa8] sm:$0xff]
    %v957 = vld [vmem:[%s934 + $0xb0] sm:$0xff]
    %v958 = vld [vmem:[%s934 + $0xb8] sm:$0xff]
    %v959 = vld [vmem:[%s934 + $0xc0] sm:$0xff]
    %v960 = vld [vmem:[%s934 + $0xc8] sm:$0xff]
    %v961 = vld [vmem:[%s934 + $0xd0] sm:$0xff]
    %v962 = vld [vmem:[%s934 + $0xd8] sm:$0xff]
    %v963 = vld [vmem:[%s934 + $0xe0] sm:$0xff]
    %v964 = vld [vmem:[%s934 + $0xe8] sm:$0xff]
    %v965 = vld [vmem:[%s934 + $0xf0] sm:$0xff]
    %v966 = vld [vmem:[%s934 + $0xf8] sm:$0xff]
    %967 = vmatprep.subr.mxu0 0.0
    %968 = vmatpush1.msra.mxu0 %v950
    %969 = vmatprep.subr.mxu0 0.0
    %970 = vmatpush1.msra.mxu0 %v949
    %971 = vmatprep.subr.mxu0 0.0
    %972 = vmatpush1.msra.mxu0 %v948
    %973 = vmatprep.subr.mxu0 0.0
    %974 = vmatpush1.msra.mxu0 %v947
    %975 = vmatprep.subr.mxu0 0.0
    %976 = vmatpush1.msra.mxu0 %v946
    %977 = vmatprep.subr.mxu0 0.0
    %978 = vmatpush1.msra.mxu0 %v945
    %979 = vmatprep.subr.mxu0 0.0
    %980 = vmatpush1.msra.mxu0 %v944
    %981 = vmatprep.subr.mxu0 0.0
    %982 = vmatpush1.msra.mxu0 %v943
    %983 = vmatprep.subr.mxu0 0.0
    %984 = vmatpush1.msra.mxu0 %v942
    %985 = vmatprep.subr.mxu0 0.0
    %986 = vmatpush1.msra.mxu0 %v941
    %987 = vmatprep.subr.mxu0 0.0
    %988 = vmatpush1.msra.mxu0 %v940
    %989 = vmatprep.subr.mxu0 0.0
    %990 = vmatpush1.msra.mxu0 %v939
    %991 = vmatprep.subr.mxu0 0.0
    %992 = vmatpush1.msra.mxu0 %v938
    %993 = vmatprep.subr.mxu0 0.0
    %994 = vmatpush1.msra.mxu0 %v937
    %995 = vmatprep.subr.mxu0 0.0
    %996 = vmatpush1.msra.mxu0 %v936
    %997 = vmatprep.subr.mxu0 0.0
    %998 = vmatpush1.msra.mxu0 %v935
    %999 = vmatprep.subr.mxu0 0.0
    %1000 = vmatpush2.msra.mxu0 %v966
    %1001 = vmatprep.subr.mxu0 0.0
    %1002 = vmatpush2.msra.mxu0 %v965
    %1003 = vmatprep.subr.mxu0 0.0
    %1004 = vmatpush2.msra.mxu0 %v964
    %1005 = vmatprep.subr.mxu0 0.0
    %1006 = vmatpush2.msra.mxu0 %v963
    %1007 = vmatprep.subr.mxu0 0.0
    %1008 = vmatpush2.msra.mxu0 %v962
    %1009 = vmatprep.subr.mxu0 0.0
    %1010 = vmatpush2.msra.mxu0 %v961
    %1011 = vmatprep.subr.mxu0 0.0
    %1012 = vmatpush2.msra.mxu0 %v960
    %1013 = vmatprep.subr.mxu0 0.0
    %1014 = vmatpush2.msra.mxu0 %v959
    %1015 = vmatprep.subr.mxu0 0.0
    %1016 = vmatpush2.msra.mxu0 %v958
    %1017 = vmatprep.subr.mxu0 0.0
    %1018 = vmatpush2.msra.mxu0 %v957
    %1019 = vmatprep.subr.mxu0 0.0
    %1020 = vmatpush2.msra.mxu0 %v956
    %1021 = vmatprep.subr.mxu0 0.0
    %1022 = vmatpush2.msra.mxu0 %v955
    %1023 = vmatprep.subr.mxu0 0.0
    %1024 = vmatpush2.msra.mxu0 %v954
    %1025 = vmatprep.subr.mxu0 0.0
    %1026 = vmatpush2.msra.mxu0 %v953
    %1027 = vmatprep.subr.mxu0 0.0
    %1028 = vmatpush2.msra.mxu0 %v952
    %1029 = vmatprep.subr.mxu0 0.0
    %1030 = vmatpush2.msra.mxu0 %v951
    %1031 = vmatprep.mubr.f32.mxu0 %v933
    %1032 = vmatmul.mubr.f32.gmra.mxu0 %v932
    %v1033 = vpop.f32.mrf.mxu0
    %v1034 = vadd.f32 0.0, %v1033
    %v1035 = vpop.f32.mrf.mxu0
    %1036 = vdwg.mxu0
    %v1037 = vadd.f32 %v847, %v1034
    %s1038 = scalar_lea.vmem [#allocation2], 80
    %v1039 = vld [vmem:[%s1038] sm:$0xff]
    %v1040 = vld [vmem:[%s1038 + $0x8] sm:$0xff]
    %v1041 = vld [vmem:[%s1038 + $0xa0] sm:$0xff]
    %v1042 = vld [vmem:[%s1038 + $0xa8] sm:$0xff]
    %v1043 = vld [vmem:[%s1038 + $0x140] sm:$0xff]
    %v1044 = vld [vmem:[%s1038 + $0x148] sm:$0xff]
    %v1045 = vld [vmem:[%s1038 + $0x1e0] sm:$0xff]
    %v1046 = vld [vmem:[%s1038 + $0x1e8] sm:$0xff]
    %v1047 = vld [vmem:[%s1038 + $0x280] sm:$0xff]
    %v1048 = vld [vmem:[%s1038 + $0x288] sm:$0xff]
    %v1049 = vld [vmem:[%s1038 + $0x320] sm:$0xff]
    %v1050 = vld [vmem:[%s1038 + $0x328] sm:$0xff]
    %1051 = vmatprep.subr.mxu0 0.0
    %1052 = vmatpush1.msra.mxu0 0.0
    %1053 = vmatprep.subr.mxu0 0.0
    %1054 = vmatpush1.msra.mxu0 0.0
    %1055 = vmatprep.subr.mxu0 0.0
    %1056 = vmatpush1.msra.mxu0 0.0
    %1057 = vmatprep.subr.mxu0 0.0
    %1058 = vmatpush1.msra.mxu0 0.0
    %1059 = vmatprep.subr.mxu0 0.0
    %1060 = vmatpush1.msra.mxu0 0.0
    %1061 = vmatprep.subr.mxu0 0.0
    %1062 = vmatpush1.msra.mxu0 0.0
    %1063 = vmatprep.subr.mxu0 0.0
    %1064 = vmatpush1.msra.mxu0 0.0
    %1065 = vmatprep.subr.mxu0 0.0
    %1066 = vmatpush1.msra.mxu0 0.0
    %1067 = vmatprep.subr.mxu0 0.0
    %1068 = vmatpush1.msra.mxu0 0.0
    %1069 = vmatprep.subr.mxu0 0.0
    %1070 = vmatpush1.msra.mxu0 0.0
    %1071 = vmatprep.subr.mxu0 %v1050
    %1072 = vmatpush1.msra.mxu0 %v1049
    %1073 = vmatprep.subr.mxu0 %v1048
    %1074 = vmatpush1.msra.mxu0 %v1047
    %1075 = vmatprep.subr.mxu0 %v1046
    %1076 = vmatpush1.msra.mxu0 %v1045
    %1077 = vmatprep.subr.mxu0 %v1044
    %1078 = vmatpush1.msra.mxu0 %v1043
    %1079 = vmatprep.subr.mxu0 %v1042
    %1080 = vmatpush1.msra.mxu0 %v1041
    %1081 = vmatprep.subr.mxu0 %v1040
    %1082 = vmatpush1.msra.mxu0 %v1039
    %1083 = vmatprep.subr.mxu0 0.0
    %1084 = vmatpush2.msra.mxu0 0.0
    %1085 = vmatprep.subr.mxu0 0.0
    %1086 = vmatpush2.msra.mxu0 0.0
    %1087 = vmatprep.subr.mxu0 0.0
    %1088 = vmatpush2.msra.mxu0 0.0
    %1089 = vmatprep.subr.mxu0 0.0
    %1090 = vmatpush2.msra.mxu0 0.0
    %1091 = vmatprep.subr.mxu0 0.0
    %1092 = vmatpush2.msra.mxu0 0.0
    %1093 = vmatprep.subr.mxu0 0.0
    %1094 = vmatpush2.msra.mxu0 0.0
    %1095 = vmatprep.subr.mxu0 0.0
    %1096 = vmatpush2.msra.mxu0 0.0
    %1097 = vmatprep.subr.mxu0 0.0
    %1098 = vmatpush2.msra.mxu0 0.0
    %1099 = vmatprep.subr.mxu0 0.0
    %1100 = vmatpush2.msra.mxu0 0.0
    %1101 = vmatprep.subr.mxu0 0.0
    %1102 = vmatpush2.msra.mxu0 0.0
    %1103 = vmatprep.subr.mxu0 0.0
    %1104 = vmatpush2.msra.mxu0 0.0
    %1105 = vmatprep.subr.mxu0 0.0
    %1106 = vmatpush2.msra.mxu0 0.0
    %1107 = vmatprep.subr.mxu0 0.0
    %1108 = vmatpush2.msra.mxu0 0.0
    %1109 = vmatprep.subr.mxu0 0.0
    %1110 = vmatpush2.msra.mxu0 0.0
    %1111 = vmatprep.subr.mxu0 0.0
    %1112 = vmatpush2.msra.mxu0 0.0
    %1113 = vmatprep.subr.mxu0 0.0
    %1114 = vmatpush2.msra.mxu0 0.0
    %1115 = vmatprep.mubr.f32.mxu0 0.0
    %1116 = vmatmul.mubr.f32.gmra.mxu0 %v102
    %v1117 = vpop.f32.mrf.mxu0
    %v1118 = vadd.f32 0.0, %v1117
    %v1119 = vpop.f32.mrf.mxu0
    %v1120 = vadd.f32 0.0, %v1119
    %1121 = vdwg.mxu0
    %v1122 = vmax.f32 %v1118, 0.0
    %v1123 = vmax.f32 %v1120, 0.0
    %s1124 = scalar_lea.vmem [#allocation4], 1280
    %v1125 = vld [vmem:[%s1124] sm:$0xff]
    %v1126 = vld [vmem:[%s1124 + $0x8] sm:$0xff]
    %v1127 = vld [vmem:[%s1124 + $0x10] sm:$0xff]
    %v1128 = vld [vmem:[%s1124 + $0x18] sm:$0xff]
    %v1129 = vld [vmem:[%s1124 + $0x20] sm:$0xff]
    %v1130 = vld [vmem:[%s1124 + $0x28] sm:$0xff]
    %v1131 = vld [vmem:[%s1124 + $0x30] sm:$0xff]
    %v1132 = vld [vmem:[%s1124 + $0x38] sm:$0xff]
    %v1133 = vld [vmem:[%s1124 + $0x40] sm:$0xff]
    %v1134 = vld [vmem:[%s1124 + $0x48] sm:$0xff]
    %v1135 = vld [vmem:[%s1124 + $0x50] sm:$0xff]
    %v1136 = vld [vmem:[%s1124 + $0x58] sm:$0xff]
    %v1137 = vld [vmem:[%s1124 + $0x60] sm:$0xff]
    %v1138 = vld [vmem:[%s1124 + $0x68] sm:$0xff]
    %v1139 = vld [vmem:[%s1124 + $0x70] sm:$0xff]
    %v1140 = vld [vmem:[%s1124 + $0x78] sm:$0xff]
    %v1141 = vld [vmem:[%s1124 + $0x80] sm:$0xff]
    %v1142 = vld [vmem:[%s1124 + $0x88] sm:$0xff]
    %v1143 = vld [vmem:[%s1124 + $0x90] sm:$0xff]
    %v1144 = vld [vmem:[%s1124 + $0x98] sm:$0xff]
    %v1145 = vld [vmem:[%s1124 + $0xa0] sm:$0xff]
    %v1146 = vld [vmem:[%s1124 + $0xa8] sm:$0xff]
    %v1147 = vld [vmem:[%s1124 + $0xb0] sm:$0xff]
    %v1148 = vld [vmem:[%s1124 + $0xb8] sm:$0xff]
    %v1149 = vld [vmem:[%s1124 + $0xc0] sm:$0xff]
    %v1150 = vld [vmem:[%s1124 + $0xc8] sm:$0xff]
    %v1151 = vld [vmem:[%s1124 + $0xd0] sm:$0xff]
    %v1152 = vld [vmem:[%s1124 + $0xd8] sm:$0xff]
    %v1153 = vld [vmem:[%s1124 + $0xe0] sm:$0xff]
    %v1154 = vld [vmem:[%s1124 + $0xe8] sm:$0xff]
    %v1155 = vld [vmem:[%s1124 + $0xf0] sm:$0xff]
    %v1156 = vld [vmem:[%s1124 + $0xf8] sm:$0xff]
    %1157 = vmatprep.subr.mxu0 0.0
    %1158 = vmatpush1.msra.mxu0 %v1140
    %1159 = vmatprep.subr.mxu0 0.0
    %1160 = vmatpush1.msra.mxu0 %v1139
    %1161 = vmatprep.subr.mxu0 0.0
    %1162 = vmatpush1.msra.mxu0 %v1138
    %1163 = vmatprep.subr.mxu0 0.0
    %1164 = vmatpush1.msra.mxu0 %v1137
    %1165 = vmatprep.subr.mxu0 0.0
    %1166 = vmatpush1.msra.mxu0 %v1136
    %1167 = vmatprep.subr.mxu0 0.0
    %1168 = vmatpush1.msra.mxu0 %v1135
    %1169 = vmatprep.subr.mxu0 0.0
    %1170 = vmatpush1.msra.mxu0 %v1134
    %1171 = vmatprep.subr.mxu0 0.0
    %1172 = vmatpush1.msra.mxu0 %v1133
    %1173 = vmatprep.subr.mxu0 0.0
    %1174 = vmatpush1.msra.mxu0 %v1132
    %1175 = vmatprep.subr.mxu0 0.0
    %1176 = vmatpush1.msra.mxu0 %v1131
    %1177 = vmatprep.subr.mxu0 0.0
    %1178 = vmatpush1.msra.mxu0 %v1130
    %1179 = vmatprep.subr.mxu0 0.0
    %1180 = vmatpush1.msra.mxu0 %v1129
    %1181 = vmatprep.subr.mxu0 0.0
    %1182 = vmatpush1.msra.mxu0 %v1128
    %1183 = vmatprep.subr.mxu0 0.0
    %1184 = vmatpush1.msra.mxu0 %v1127
    %1185 = vmatprep.subr.mxu0 0.0
    %1186 = vmatpush1.msra.mxu0 %v1126
    %1187 = vmatprep.subr.mxu0 0.0
    %1188 = vmatpush1.msra.mxu0 %v1125
    %1189 = vmatprep.subr.mxu0 0.0
    %1190 = vmatpush2.msra.mxu0 %v1156
    %1191 = vmatprep.subr.mxu0 0.0
    %1192 = vmatpush2.msra.mxu0 %v1155
    %1193 = vmatprep.subr.mxu0 0.0
    %1194 = vmatpush2.msra.mxu0 %v1154
    %1195 = vmatprep.subr.mxu0 0.0
    %1196 = vmatpush2.msra.mxu0 %v1153
    %1197 = vmatprep.subr.mxu0 0.0
    %1198 = vmatpush2.msra.mxu0 %v1152
    %1199 = vmatprep.subr.mxu0 0.0
    %1200 = vmatpush2.msra.mxu0 %v1151
    %1201 = vmatprep.subr.mxu0 0.0
    %1202 = vmatpush2.msra.mxu0 %v1150
    %1203 = vmatprep.subr.mxu0 0.0
    %1204 = vmatpush2.msra.mxu0 %v1149
    %1205 = vmatprep.subr.mxu0 0.0
    %1206 = vmatpush2.msra.mxu0 %v1148
    %1207 = vmatprep.subr.mxu0 0.0
    %1208 = vmatpush2.msra.mxu0 %v1147
    %1209 = vmatprep.subr.mxu0 0.0
    %1210 = vmatpush2.msra.mxu0 %v1146
    %1211 = vmatprep.subr.mxu0 0.0
    %1212 = vmatpush2.msra.mxu0 %v1145
    %1213 = vmatprep.subr.mxu0 0.0
    %1214 = vmatpush2.msra.mxu0 %v1144
    %1215 = vmatprep.subr.mxu0 0.0
    %1216 = vmatpush2.msra.mxu0 %v1143
    %1217 = vmatprep.subr.mxu0 0.0
    %1218 = vmatpush2.msra.mxu0 %v1142
    %1219 = vmatprep.subr.mxu0 0.0
    %1220 = vmatpush2.msra.mxu0 %v1141
    %1221 = vmatprep.mubr.f32.mxu0 %v1123
    %1222 = vmatmul.mubr.f32.gmra.mxu0 %v1122
    %v1223 = vpop.f32.mrf.mxu0
    %v1224 = vadd.f32 0.0, %v1223
    %v1225 = vpop.f32.mrf.mxu0
    %1226 = vdwg.mxu0
    %v1227 = vadd.f32 %v1037, %v1224
    %s1228 = scalar_lea.vmem [#allocation2], 96
    %v1229 = vld [vmem:[%s1228] sm:$0xff]
    %v1230 = vld [vmem:[%s1228 + $0x8] sm:$0xff]
    %v1231 = vld [vmem:[%s1228 + $0xa0] sm:$0xff]
    %v1232 = vld [vmem:[%s1228 + $0xa8] sm:$0xff]
    %v1233 = vld [vmem:[%s1228 + $0x140] sm:$0xff]
    %v1234 = vld [vmem:[%s1228 + $0x148] sm:$0xff]
    %v1235 = vld [vmem:[%s1228 + $0x1e0] sm:$0xff]
    %v1236 = vld [vmem:[%s1228 + $0x1e8] sm:$0xff]
    %v1237 = vld [vmem:[%s1228 + $0x280] sm:$0xff]
    %v1238 = vld [vmem:[%s1228 + $0x288] sm:$0xff]
    %v1239 = vld [vmem:[%s1228 + $0x320] sm:$0xff]
    %v1240 = vld [vmem:[%s1228 + $0x328] sm:$0xff]
    %1241 = vmatprep.subr.mxu0 0.0
    %1242 = vmatpush1.msra.mxu0 0.0
    %1243 = vmatprep.subr.mxu0 0.0
    %1244 = vmatpush1.msra.mxu0 0.0
    %1245 = vmatprep.subr.mxu0 0.0
    %1246 = vmatpush1.msra.mxu0 0.0
    %1247 = vmatprep.subr.mxu0 0.0
    %1248 = vmatpush1.msra.mxu0 0.0
    %1249 = vmatprep.subr.mxu0 0.0
    %1250 = vmatpush1.msra.mxu0 0.0
    %1251 = vmatprep.subr.mxu0 0.0
    %1252 = vmatpush1.msra.mxu0 0.0
    %1253 = vmatprep.subr.mxu0 0.0
    %1254 = vmatpush1.msra.mxu0 0.0
    %1255 = vmatprep.subr.mxu0 0.0
    %1256 = vmatpush1.msra.mxu0 0.0
    %1257 = vmatprep.subr.mxu0 0.0
    %1258 = vmatpush1.msra.mxu0 0.0
    %1259 = vmatprep.subr.mxu0 0.0
    %1260 = vmatpush1.msra.mxu0 0.0
    %1261 = vmatprep.subr.mxu0 %v1240
    %1262 = vmatpush1.msra.mxu0 %v1239
    %1263 = vmatprep.subr.mxu0 %v1238
    %1264 = vmatpush1.msra.mxu0 %v1237
    %1265 = vmatprep.subr.mxu0 %v1236
    %1266 = vmatpush1.msra.mxu0 %v1235
    %1267 = vmatprep.subr.mxu0 %v1234
    %1268 = vmatpush1.msra.mxu0 %v1233
    %1269 = vmatprep.subr.mxu0 %v1232
    %1270 = vmatpush1.msra.mxu0 %v1231
    %1271 = vmatprep.subr.mxu0 %v1230
    %1272 = vmatpush1.msra.mxu0 %v1229
    %1273 = vmatprep.subr.mxu0 0.0
    %1274 = vmatpush2.msra.mxu0 0.0
    %1275 = vmatprep.subr.mxu0 0.0
    %1276 = vmatpush2.msra.mxu0 0.0
    %1277 = vmatprep.subr.mxu0 0.0
    %1278 = vmatpush2.msra.mxu0 0.0
    %1279 = vmatprep.subr.mxu0 0.0
    %1280 = vmatpush2.msra.mxu0 0.0
    %1281 = vmatprep.subr.mxu0 0.0
    %1282 = vmatpush2.msra.mxu0 0.0
    %1283 = vmatprep.subr.mxu0 0.0
    %1284 = vmatpush2.msra.mxu0 0.0
    %1285 = vmatprep.subr.mxu0 0.0
    %1286 = vmatpush2.msra.mxu0 0.0
    %1287 = vmatprep.subr.mxu0 0.0
    %1288 = vmatpush2.msra.mxu0 0.0
    %1289 = vmatprep.subr.mxu0 0.0
    %1290 = vmatpush2.msra.mxu0 0.0
    %1291 = vmatprep.subr.mxu0 0.0
    %1292 = vmatpush2.msra.mxu0 0.0
    %1293 = vmatprep.subr.mxu0 0.0
    %1294 = vmatpush2.msra.mxu0 0.0
    %1295 = vmatprep.subr.mxu0 0.0
    %1296 = vmatpush2.msra.mxu0 0.0
    %1297 = vmatprep.subr.mxu0 0.0
    %1298 = vmatpush2.msra.mxu0 0.0
    %1299 = vmatprep.subr.mxu0 0.0
    %1300 = vmatpush2.msra.mxu0 0.0
    %1301 = vmatprep.subr.mxu0 0.0
    %1302 = vmatpush2.msra.mxu0 0.0
    %1303 = vmatprep.subr.mxu0 0.0
    %1304 = vmatpush2.msra.mxu0 0.0
    %1305 = vmatprep.mubr.f32.mxu0 0.0
    %1306 = vmatmul.mubr.f32.gmra.mxu0 %v102
    %v1307 = vpop.f32.mrf.mxu0
    %v1308 = vadd.f32 0.0, %v1307
    %v1309 = vpop.f32.mrf.mxu0
    %v1310 = vadd.f32 0.0, %v1309
    %1311 = vdwg.mxu0
    %v1312 = vmax.f32 %v1308, 0.0
    %v1313 = vmax.f32 %v1310, 0.0
    %s1314 = scalar_lea.vmem [#allocation4], 1536
    %v1315 = vld [vmem:[%s1314] sm:$0xff]
    %v1316 = vld [vmem:[%s1314 + $0x8] sm:$0xff]
    %v1317 = vld [vmem:[%s1314 + $0x10] sm:$0xff]
    %v1318 = vld [vmem:[%s1314 + $0x18] sm:$0xff]
    %v1319 = vld [vmem:[%s1314 + $0x20] sm:$0xff]
    %v1320 = vld [vmem:[%s1314 + $0x28] sm:$0xff]
    %v1321 = vld [vmem:[%s1314 + $0x30] sm:$0xff]
    %v1322 = vld [vmem:[%s1314 + $0x38] sm:$0xff]
    %v1323 = vld [vmem:[%s1314 + $0x40] sm:$0xff]
    %v1324 = vld [vmem:[%s1314 + $0x48] sm:$0xff]
    %v1325 = vld [vmem:[%s1314 + $0x50] sm:$0xff]
    %v1326 = vld [vmem:[%s1314 + $0x58] sm:$0xff]
    %v1327 = vld [vmem:[%s1314 + $0x60] sm:$0xff]
    %v1328 = vld [vmem:[%s1314 + $0x68] sm:$0xff]
    %v1329 = vld [vmem:[%s1314 + $0x70] sm:$0xff]
    %v1330 = vld [vmem:[%s1314 + $0x78] sm:$0xff]
    %v1331 = vld [vmem:[%s1314 + $0x80] sm:$0xff]
    %v1332 = vld [vmem:[%s1314 + $0x88] sm:$0xff]
    %v1333 = vld [vmem:[%s1314 + $0x90] sm:$0xff]
    %v1334 = vld [vmem:[%s1314 + $0x98] sm:$0xff]
    %v1335 = vld [vmem:[%s1314 + $0xa0] sm:$0xff]
    %v1336 = vld [vmem:[%s1314 + $0xa8] sm:$0xff]
    %v1337 = vld [vmem:[%s1314 + $0xb0] sm:$0xff]
    %v1338 = vld [vmem:[%s1314 + $0xb8] sm:$0xff]
    %v1339 = vld [vmem:[%s1314 + $0xc0] sm:$0xff]
    %v1340 = vld [vmem:[%s1314 + $0xc8] sm:$0xff]
    %v1341 = vld [vmem:[%s1314 + $0xd0] sm:$0xff]
    %v1342 = vld [vmem:[%s1314 + $0xd8] sm:$0xff]
    %v1343 = vld [vmem:[%s1314 + $0xe0] sm:$0xff]
    %v1344 = vld [vmem:[%s1314 + $0xe8] sm:$0xff]
    %v1345 = vld [vmem:[%s1314 + $0xf0] sm:$0xff]
    %v1346 = vld [vmem:[%s1314 + $0xf8] sm:$0xff]
    %1347 = vmatprep.subr.mxu0 0.0
    %1348 = vmatpush1.msra.mxu0 %v1330
    %1349 = vmatprep.subr.mxu0 0.0
    %1350 = vmatpush1.msra.mxu0 %v1329
    %1351 = vmatprep.subr.mxu0 0.0
    %1352 = vmatpush1.msra.mxu0 %v1328
    %1353 = vmatprep.subr.mxu0 0.0
    %1354 = vmatpush1.msra.mxu0 %v1327
    %1355 = vmatprep.subr.mxu0 0.0
    %1356 = vmatpush1.msra.mxu0 %v1326
    %1357 = vmatprep.subr.mxu0 0.0
    %1358 = vmatpush1.msra.mxu0 %v1325
    %1359 = vmatprep.subr.mxu0 0.0
    %1360 = vmatpush1.msra.mxu0 %v1324
    %1361 = vmatprep.subr.mxu0 0.0
    %1362 = vmatpush1.msra.mxu0 %v1323
    %1363 = vmatprep.subr.mxu0 0.0
    %1364 = vmatpush1.msra.mxu0 %v1322
    %1365 = vmatprep.subr.mxu0 0.0
    %1366 = vmatpush1.msra.mxu0 %v1321
    %1367 = vmatprep.subr.mxu0 0.0
    %1368 = vmatpush1.msra.mxu0 %v1320
    %1369 = vmatprep.subr.mxu0 0.0
    %1370 = vmatpush1.msra.mxu0 %v1319
    %1371 = vmatprep.subr.mxu0 0.0
    %1372 = vmatpush1.msra.mxu0 %v1318
    %1373 = vmatprep.subr.mxu0 0.0
    %1374 = vmatpush1.msra.mxu0 %v1317
    %1375 = vmatprep.subr.mxu0 0.0
    %1376 = vmatpush1.msra.mxu0 %v1316
    %1377 = vmatprep.subr.mxu0 0.0
    %1378 = vmatpush1.msra.mxu0 %v1315
    %1379 = vmatprep.subr.mxu0 0.0
    %1380 = vmatpush2.msra.mxu0 %v1346
    %1381 = vmatprep.subr.mxu0 0.0
    %1382 = vmatpush2.msra.mxu0 %v1345
    %1383 = vmatprep.subr.mxu0 0.0
    %1384 = vmatpush2.msra.mxu0 %v1344
    %1385 = vmatprep.subr.mxu0 0.0
    %1386 = vmatpush2.msra.mxu0 %v1343
    %1387 = vmatprep.subr.mxu0 0.0
    %1388 = vmatpush2.msra.mxu0 %v1342
    %1389 = vmatprep.subr.mxu0 0.0
    %1390 = vmatpush2.msra.mxu0 %v1341
    %1391 = vmatprep.subr.mxu0 0.0
    %1392 = vmatpush2.msra.mxu0 %v1340
    %1393 = vmatprep.subr.mxu0 0.0
    %1394 = vmatpush2.msra.mxu0 %v1339
    %1395 = vmatprep.subr.mxu0 0.0
    %1396 = vmatpush2.msra.mxu0 %v1338
    %1397 = vmatprep.subr.mxu0 0.0
    %1398 = vmatpush2.msra.mxu0 %v1337
    %1399 = vmatprep.subr.mxu0 0.0
    %1400 = vmatpush2.msra.mxu0 %v1336
    %1401 = vmatprep.subr.mxu0 0.0
    %1402 = vmatpush2.msra.mxu0 %v1335
    %1403 = vmatprep.subr.mxu0 0.0
    %1404 = vmatpush2.msra.mxu0 %v1334
    %1405 = vmatprep.subr.mxu0 0.0
    %1406 = vmatpush2.msra.mxu0 %v1333
    %1407 = vmatprep.subr.mxu0 0.0
    %1408 = vmatpush2.msra.mxu0 %v1332
    %1409 = vmatprep.subr.mxu0 0.0
    %1410 = vmatpush2.msra.mxu0 %v1331
    %1411 = vmatprep.mubr.f32.mxu0 %v1313
    %1412 = vmatmul.mubr.f32.gmra.mxu0 %v1312
    %v1413 = vpop.f32.mrf.mxu0
    %v1414 = vadd.f32 0.0, %v1413
    %v1415 = vpop.f32.mrf.mxu0
    %1416 = vdwg.mxu0
    %v1417 = vadd.f32 %v1227, %v1414
    %s1418 = scalar_lea.vmem [#allocation2], 112
    %v1419 = vld [vmem:[%s1418] sm:$0xff]
    %v1420 = vld [vmem:[%s1418 + $0x8] sm:$0xff]
    %v1421 = vld [vmem:[%s1418 + $0xa0] sm:$0xff]
    %v1422 = vld [vmem:[%s1418 + $0xa8] sm:$0xff]
    %v1423 = vld [vmem:[%s1418 + $0x140] sm:$0xff]
    %v1424 = vld [vmem:[%s1418 + $0x148] sm:$0xff]
    %v1425 = vld [vmem:[%s1418 + $0x1e0] sm:$0xff]
    %v1426 = vld [vmem:[%s1418 + $0x1e8] sm:$0xff]
    %v1427 = vld [vmem:[%s1418 + $0x280] sm:$0xff]
    %v1428 = vld [vmem:[%s1418 + $0x288] sm:$0xff]
    %v1429 = vld [vmem:[%s1418 + $0x320] sm:$0xff]
    %v1430 = vld [vmem:[%s1418 + $0x328] sm:$0xff]
    %1431 = vmatprep.subr.mxu0 0.0
    %1432 = vmatpush1.msra.mxu0 0.0
    %1433 = vmatprep.subr.mxu0 0.0
    %1434 = vmatpush1.msra.mxu0 0.0
    %1435 = vmatprep.subr.mxu0 0.0
    %1436 = vmatpush1.msra.mxu0 0.0
    %1437 = vmatprep.subr.mxu0 0.0
    %1438 = vmatpush1.msra.mxu0 0.0
    %1439 = vmatprep.subr.mxu0 0.0
    %1440 = vmatpush1.msra.mxu0 0.0
    %1441 = vmatprep.subr.mxu0 0.0
    %1442 = vmatpush1.msra.mxu0 0.0
    %1443 = vmatprep.subr.mxu0 0.0
    %1444 = vmatpush1.msra.mxu0 0.0
    %1445 = vmatprep.subr.mxu0 0.0
    %1446 = vmatpush1.msra.mxu0 0.0
    %1447 = vmatprep.subr.mxu0 0.0
    %1448 = vmatpush1.msra.mxu0 0.0
    %1449 = vmatprep.subr.mxu0 0.0
    %1450 = vmatpush1.msra.mxu0 0.0
    %1451 = vmatprep.subr.mxu0 %v1430
    %1452 = vmatpush1.msra.mxu0 %v1429
    %1453 = vmatprep.subr.mxu0 %v1428
    %1454 = vmatpush1.msra.mxu0 %v1427
    %1455 = vmatprep.subr.mxu0 %v1426
    %1456 = vmatpush1.msra.mxu0 %v1425
    %1457 = vmatprep.subr.mxu0 %v1424
    %1458 = vmatpush1.msra.mxu0 %v1423
    %1459 = vmatprep.subr.mxu0 %v1422
    %1460 = vmatpush1.msra.mxu0 %v1421
    %1461 = vmatprep.subr.mxu0 %v1420
    %1462 = vmatpush1.msra.mxu0 %v1419
    %1463 = vmatprep.subr.mxu0 0.0
    %1464 = vmatpush2.msra.mxu0 0.0
    %1465 = vmatprep.subr.mxu0 0.0
    %1466 = vmatpush2.msra.mxu0 0.0
    %1467 = vmatprep.subr.mxu0 0.0
    %1468 = vmatpush2.msra.mxu0 0.0
    %1469 = vmatprep.subr.mxu0 0.0
    %1470 = vmatpush2.msra.mxu0 0.0
    %1471 = vmatprep.subr.mxu0 0.0
    %1472 = vmatpush2.msra.mxu0 0.0
    %1473 = vmatprep.subr.mxu0 0.0
    %1474 = vmatpush2.msra.mxu0 0.0
    %1475 = vmatprep.subr.mxu0 0.0
    %1476 = vmatpush2.msra.mxu0 0.0
    %1477 = vmatprep.subr.mxu0 0.0
    %1478 = vmatpush2.msra.mxu0 0.0
    %1479 = vmatprep.subr.mxu0 0.0
    %1480 = vmatpush2.msra.mxu0 0.0
    %1481 = vmatprep.subr.mxu0 0.0
    %1482 = vmatpush2.msra.mxu0 0.0
    %1483 = vmatprep.subr.mxu0 0.0
    %1484 = vmatpush2.msra.mxu0 0.0
    %1485 = vmatprep.subr.mxu0 0.0
    %1486 = vmatpush2.msra.mxu0 0.0
    %1487 = vmatprep.subr.mxu0 0.0
    %1488 = vmatpush2.msra.mxu0 0.0
    %1489 = vmatprep.subr.mxu0 0.0
    %1490 = vmatpush2.msra.mxu0 0.0
    %1491 = vmatprep.subr.mxu0 0.0
    %1492 = vmatpush2.msra.mxu0 0.0
    %1493 = vmatprep.subr.mxu0 0.0
    %1494 = vmatpush2.msra.mxu0 0.0
    %1495 = vmatprep.mubr.f32.mxu0 0.0
    %1496 = vmatmul.mubr.f32.gmra.mxu0 %v102
    %v1497 = vpop.f32.mrf.mxu0
    %v1498 = vadd.f32 0.0, %v1497
    %v1499 = vpop.f32.mrf.mxu0
    %v1500 = vadd.f32 0.0, %v1499
    %1501 = vdwg.mxu0
    %v1502 = vmax.f32 %v1498, 0.0
    %v1503 = vmax.f32 %v1500, 0.0
    %s1504 = scalar_lea.vmem [#allocation4], 1792
    %v1505 = vld [vmem:[%s1504] sm:$0xff]
    %v1506 = vld [vmem:[%s1504 + $0x8] sm:$0xff]
    %v1507 = vld [vmem:[%s1504 + $0x10] sm:$0xff]
    %v1508 = vld [vmem:[%s1504 + $0x18] sm:$0xff]
    %v1509 = vld [vmem:[%s1504 + $0x20] sm:$0xff]
    %v1510 = vld [vmem:[%s1504 + $0x28] sm:$0xff]
    %v1511 = vld [vmem:[%s1504 + $0x30] sm:$0xff]
    %v1512 = vld [vmem:[%s1504 + $0x38] sm:$0xff]
    %v1513 = vld [vmem:[%s1504 + $0x40] sm:$0xff]
    %v1514 = vld [vmem:[%s1504 + $0x48] sm:$0xff]
    %v1515 = vld [vmem:[%s1504 + $0x50] sm:$0xff]
    %v1516 = vld [vmem:[%s1504 + $0x58] sm:$0xff]
    %v1517 = vld [vmem:[%s1504 + $0x60] sm:$0xff]
    %v1518 = vld [vmem:[%s1504 + $0x68] sm:$0xff]
    %v1519 = vld [vmem:[%s1504 + $0x70] sm:$0xff]
    %v1520 = vld [vmem:[%s1504 + $0x78] sm:$0xff]
    %v1521 = vld [vmem:[%s1504 + $0x80] sm:$0xff]
    %v1522 = vld [vmem:[%s1504 + $0x88] sm:$0xff]
    %v1523 = vld [vmem:[%s1504 + $0x90] sm:$0xff]
    %v1524 = vld [vmem:[%s1504 + $0x98] sm:$0xff]
    %v1525 = vld [vmem:[%s1504 + $0xa0] sm:$0xff]
    %v1526 = vld [vmem:[%s1504 + $0xa8] sm:$0xff]
    %v1527 = vld [vmem:[%s1504 + $0xb0] sm:$0xff]
    %v1528 = vld [vmem:[%s1504 + $0xb8] sm:$0xff]
    %v1529 = vld [vmem:[%s1504 + $0xc0] sm:$0xff]
    %v1530 = vld [vmem:[%s1504 + $0xc8] sm:$0xff]
    %v1531 = vld [vmem:[%s1504 + $0xd0] sm:$0xff]
    %v1532 = vld [vmem:[%s1504 + $0xd8] sm:$0xff]
    %v1533 = vld [vmem:[%s1504 + $0xe0] sm:$0xff]
    %v1534 = vld [vmem:[%s1504 + $0xe8] sm:$0xff]
    %v1535 = vld [vmem:[%s1504 + $0xf0] sm:$0xff]
    %v1536 = vld [vmem:[%s1504 + $0xf8] sm:$0xff]
    %1537 = vmatprep.subr.mxu0 0.0
    %1538 = vmatpush1.msra.mxu0 %v1520
    %1539 = vmatprep.subr.mxu0 0.0
    %1540 = vmatpush1.msra.mxu0 %v1519
    %1541 = vmatprep.subr.mxu0 0.0
    %1542 = vmatpush1.msra.mxu0 %v1518
    %1543 = vmatprep.subr.mxu0 0.0
    %1544 = vmatpush1.msra.mxu0 %v1517
    %1545 = vmatprep.subr.mxu0 0.0
    %1546 = vmatpush1.msra.mxu0 %v1516
    %1547 = vmatprep.subr.mxu0 0.0
    %1548 = vmatpush1.msra.mxu0 %v1515
    %1549 = vmatprep.subr.mxu0 0.0
    %1550 = vmatpush1.msra.mxu0 %v1514
    %1551 = vmatprep.subr.mxu0 0.0
    %1552 = vmatpush1.msra.mxu0 %v1513
    %1553 = vmatprep.subr.mxu0 0.0
    %1554 = vmatpush1.msra.mxu0 %v1512
    %1555 = vmatprep.subr.mxu0 0.0
    %1556 = vmatpush1.msra.mxu0 %v1511
    %1557 = vmatprep.subr.mxu0 0.0
    %1558 = vmatpush1.msra.mxu0 %v1510
    %1559 = vmatprep.subr.mxu0 0.0
    %1560 = vmatpush1.msra.mxu0 %v1509
    %1561 = vmatprep.subr.mxu0 0.0
    %1562 = vmatpush1.msra.mxu0 %v1508
    %1563 = vmatprep.subr.mxu0 0.0
    %1564 = vmatpush1.msra.mxu0 %v1507
    %1565 = vmatprep.subr.mxu0 0.0
    %1566 = vmatpush1.msra.mxu0 %v1506
    %1567 = vmatprep.subr.mxu0 0.0
    %1568 = vmatpush1.msra.mxu0 %v1505
    %1569 = vmatprep.subr.mxu0 0.0
    %1570 = vmatpush2.msra.mxu0 %v1536
    %1571 = vmatprep.subr.mxu0 0.0
    %1572 = vmatpush2.msra.mxu0 %v1535
    %1573 = vmatprep.subr.mxu0 0.0
    %1574 = vmatpush2.msra.mxu0 %v1534
    %1575 = vmatprep.subr.mxu0 0.0
    %1576 = vmatpush2.msra.mxu0 %v1533
    %1577 = vmatprep.subr.mxu0 0.0
    %1578 = vmatpush2.msra.mxu0 %v1532
    %1579 = vmatprep.subr.mxu0 0.0
    %1580 = vmatpush2.msra.mxu0 %v1531
    %1581 = vmatprep.subr.mxu0 0.0
    %1582 = vmatpush2.msra.mxu0 %v1530
    %1583 = vmatprep.subr.mxu0 0.0
    %1584 = vmatpush2.msra.mxu0 %v1529
    %1585 = vmatprep.subr.mxu0 0.0
    %1586 = vmatpush2.msra.mxu0 %v1528
    %1587 = vmatprep.subr.mxu0 0.0
    %1588 = vmatpush2.msra.mxu0 %v1527
    %1589 = vmatprep.subr.mxu0 0.0
    %1590 = vmatpush2.msra.mxu0 %v1526
    %1591 = vmatprep.subr.mxu0 0.0
    %1592 = vmatpush2.msra.mxu0 %v1525
    %1593 = vmatprep.subr.mxu0 0.0
    %1594 = vmatpush2.msra.mxu0 %v1524
    %1595 = vmatprep.subr.mxu0 0.0
    %1596 = vmatpush2.msra.mxu0 %v1523
    %1597 = vmatprep.subr.mxu0 0.0
    %1598 = vmatpush2.msra.mxu0 %v1522
    %1599 = vmatprep.subr.mxu0 0.0
    %1600 = vmatpush2.msra.mxu0 %v1521
    %1601 = vmatprep.mubr.f32.mxu0 %v1503
    %1602 = vmatmul.mubr.f32.gmra.mxu0 %v1502
    %v1603 = vpop.f32.mrf.mxu0
    %v1604 = vadd.f32 0.0, %v1603
    %v1605 = vpop.f32.mrf.mxu0
    %1606 = vdwg.mxu0
    %v1607 = vadd.f32 %v1417, %v1604
    %s1608 = scalar_lea.vmem [#allocation2], 128
    %v1609 = vld [vmem:[%s1608] sm:$0xff]
    %v1610 = vld [vmem:[%s1608 + $0x8] sm:$0xff]
    %v1611 = vld [vmem:[%s1608 + $0xa0] sm:$0xff]
    %v1612 = vld [vmem:[%s1608 + $0xa8] sm:$0xff]
    %v1613 = vld [vmem:[%s1608 + $0x140] sm:$0xff]
    %v1614 = vld [vmem:[%s1608 + $0x148] sm:$0xff]
    %v1615 = vld [vmem:[%s1608 + $0x1e0] sm:$0xff]
    %v1616 = vld [vmem:[%s1608 + $0x1e8] sm:$0xff]
    %v1617 = vld [vmem:[%s1608 + $0x280] sm:$0xff]
    %v1618 = vld [vmem:[%s1608 + $0x288] sm:$0xff]
    %v1619 = vld [vmem:[%s1608 + $0x320] sm:$0xff]
    %v1620 = vld [vmem:[%s1608 + $0x328] sm:$0xff]
    %1621 = vmatprep.subr.mxu0 0.0
    %1622 = vmatpush1.msra.mxu0 0.0
    %1623 = vmatprep.subr.mxu0 0.0
    %1624 = vmatpush1.msra.mxu0 0.0
    %1625 = vmatprep.subr.mxu0 0.0
    %1626 = vmatpush1.msra.mxu0 0.0
    %1627 = vmatprep.subr.mxu0 0.0
    %1628 = vmatpush1.msra.mxu0 0.0
    %1629 = vmatprep.subr.mxu0 0.0
    %1630 = vmatpush1.msra.mxu0 0.0
    %1631 = vmatprep.subr.mxu0 0.0
    %1632 = vmatpush1.msra.mxu0 0.0
    %1633 = vmatprep.subr.mxu0 0.0
    %1634 = vmatpush1.msra.mxu0 0.0
    %1635 = vmatprep.subr.mxu0 0.0
    %1636 = vmatpush1.msra.mxu0 0.0
    %1637 = vmatprep.subr.mxu0 0.0
    %1638 = vmatpush1.msra.mxu0 0.0
    %1639 = vmatprep.subr.mxu0 0.0
    %1640 = vmatpush1.msra.mxu0 0.0
    %1641 = vmatprep.subr.mxu0 %v1620
    %1642 = vmatpush1.msra.mxu0 %v1619
    %1643 = vmatprep.subr.mxu0 %v1618
    %1644 = vmatpush1.msra.mxu0 %v1617
    %1645 = vmatprep.subr.mxu0 %v1616
    %1646 = vmatpush1.msra.mxu0 %v1615
    %1647 = vmatprep.subr.mxu0 %v1614
    %1648 = vmatpush1.msra.mxu0 %v1613
    %1649 = vmatprep.subr.mxu0 %v1612
    %1650 = vmatpush1.msra.mxu0 %v1611
    %1651 = vmatprep.subr.mxu0 %v1610
    %1652 = vmatpush1.msra.mxu0 %v1609
    %1653 = vmatprep.subr.mxu0 0.0
    %1654 = vmatpush2.msra.mxu0 0.0
    %1655 = vmatprep.subr.mxu0 0.0
    %1656 = vmatpush2.msra.mxu0 0.0
    %1657 = vmatprep.subr.mxu0 0.0
    %1658 = vmatpush2.msra.mxu0 0.0
    %1659 = vmatprep.subr.mxu0 0.0
    %1660 = vmatpush2.msra.mxu0 0.0
    %1661 = vmatprep.subr.mxu0 0.0
    %1662 = vmatpush2.msra.mxu0 0.0
    %1663 = vmatprep.subr.mxu0 0.0
    %1664 = vmatpush2.msra.mxu0 0.0
    %1665 = vmatprep.subr.mxu0 0.0
    %1666 = vmatpush2.msra.mxu0 0.0
    %1667 = vmatprep.subr.mxu0 0.0
    %1668 = vmatpush2.msra.mxu0 0.0
    %1669 = vmatprep.subr.mxu0 0.0
    %1670 = vmatpush2.msra.mxu0 0.0
    %1671 = vmatprep.subr.mxu0 0.0
    %1672 = vmatpush2.msra.mxu0 0.0
    %1673 = vmatprep.subr.mxu0 0.0
    %1674 = vmatpush2.msra.mxu0 0.0
    %1675 = vmatprep.subr.mxu0 0.0
    %1676 = vmatpush2.msra.mxu0 0.0
    %1677 = vmatprep.subr.mxu0 0.0
    %1678 = vmatpush2.msra.mxu0 0.0
    %1679 = vmatprep.subr.mxu0 0.0
    %1680 = vmatpush2.msra.mxu0 0.0
    %1681 = vmatprep.subr.mxu0 0.0
    %1682 = vmatpush2.msra.mxu0 0.0
    %1683 = vmatprep.subr.mxu0 0.0
    %1684 = vmatpush2.msra.mxu0 0.0
    %1685 = vmatprep.mubr.f32.mxu0 0.0
    %1686 = vmatmul.mubr.f32.gmra.mxu0 %v102
    %v1687 = vpop.f32.mrf.mxu0
    %v1688 = vadd.f32 0.0, %v1687
    %v1689 = vpop.f32.mrf.mxu0
    %v1690 = vadd.f32 0.0, %v1689
    %1691 = vdwg.mxu0
    %v1692 = vmax.f32 %v1688, 0.0
    %v1693 = vmax.f32 %v1690, 0.0
    %s1694 = scalar_lea.vmem [#allocation4], 2048
    %v1695 = vld [vmem:[%s1694] sm:$0xff]
    %v1696 = vld [vmem:[%s1694 + $0x8] sm:$0xff]
    %v1697 = vld [vmem:[%s1694 + $0x10] sm:$0xff]
    %v1698 = vld [vmem:[%s1694 + $0x18] sm:$0xff]
    %v1699 = vld [vmem:[%s1694 + $0x20] sm:$0xff]
    %v1700 = vld [vmem:[%s1694 + $0x28] sm:$0xff]
    %v1701 = vld [vmem:[%s1694 + $0x30] sm:$0xff]
    %v1702 = vld [vmem:[%s1694 + $0x38] sm:$0xff]
    %v1703 = vld [vmem:[%s1694 + $0x40] sm:$0xff]
    %v1704 = vld [vmem:[%s1694 + $0x48] sm:$0xff]
    %v1705 = vld [vmem:[%s1694 + $0x50] sm:$0xff]
    %v1706 = vld [vmem:[%s1694 + $0x58] sm:$0xff]
    %v1707 = vld [vmem:[%s1694 + $0x60] sm:$0xff]
    %v1708 = vld [vmem:[%s1694 + $0x68] sm:$0xff]
    %v1709 = vld [vmem:[%s1694 + $0x70] sm:$0xff]
    %v1710 = vld [vmem:[%s1694 + $0x78] sm:$0xff]
    %v1711 = vld [vmem:[%s1694 + $0x80] sm:$0xff]
    %v1712 = vld [vmem:[%s1694 + $0x88] sm:$0xff]
    %v1713 = vld [vmem:[%s1694 + $0x90] sm:$0xff]
    %v1714 = vld [vmem:[%s1694 + $0x98] sm:$0xff]
    %v1715 = vld [vmem:[%s1694 + $0xa0] sm:$0xff]
    %v1716 = vld [vmem:[%s1694 + $0xa8] sm:$0xff]
    %v1717 = vld [vmem:[%s1694 + $0xb0] sm:$0xff]
    %v1718 = vld [vmem:[%s1694 + $0xb8] sm:$0xff]
    %v1719 = vld [vmem:[%s1694 + $0xc0] sm:$0xff]
    %v1720 = vld [vmem:[%s1694 + $0xc8] sm:$0xff]
    %v1721 = vld [vmem:[%s1694 + $0xd0] sm:$0xff]
    %v1722 = vld [vmem:[%s1694 + $0xd8] sm:$0xff]
    %v1723 = vld [vmem:[%s1694 + $0xe0] sm:$0xff]
    %v1724 = vld [vmem:[%s1694 + $0xe8] sm:$0xff]
    %v1725 = vld [vmem:[%s1694 + $0xf0] sm:$0xff]
    %v1726 = vld [vmem:[%s1694 + $0xf8] sm:$0xff]
    %1727 = vmatprep.subr.mxu0 0.0
    %1728 = vmatpush1.msra.mxu0 %v1710
    %1729 = vmatprep.subr.mxu0 0.0
    %1730 = vmatpush1.msra.mxu0 %v1709
    %1731 = vmatprep.subr.mxu0 0.0
    %1732 = vmatpush1.msra.mxu0 %v1708
    %1733 = vmatprep.subr.mxu0 0.0
    %1734 = vmatpush1.msra.mxu0 %v1707
    %1735 = vmatprep.subr.mxu0 0.0
    %1736 = vmatpush1.msra.mxu0 %v1706
    %1737 = vmatprep.subr.mxu0 0.0
    %1738 = vmatpush1.msra.mxu0 %v1705
    %1739 = vmatprep.subr.mxu0 0.0
    %1740 = vmatpush1.msra.mxu0 %v1704
    %1741 = vmatprep.subr.mxu0 0.0
    %1742 = vmatpush1.msra.mxu0 %v1703
    %1743 = vmatprep.subr.mxu0 0.0
    %1744 = vmatpush1.msra.mxu0 %v1702
    %1745 = vmatprep.subr.mxu0 0.0
    %1746 = vmatpush1.msra.mxu0 %v1701
    %1747 = vmatprep.subr.mxu0 0.0
    %1748 = vmatpush1.msra.mxu0 %v1700
    %1749 = vmatprep.subr.mxu0 0.0
    %1750 = vmatpush1.msra.mxu0 %v1699
    %1751 = vmatprep.subr.mxu0 0.0
    %1752 = vmatpush1.msra.mxu0 %v1698
    %1753 = vmatprep.subr.mxu0 0.0
    %1754 = vmatpush1.msra.mxu0 %v1697
    %1755 = vmatprep.subr.mxu0 0.0
    %1756 = vmatpush1.msra.mxu0 %v1696
    %1757 = vmatprep.subr.mxu0 0.0
    %1758 = vmatpush1.msra.mxu0 %v1695
    %1759 = vmatprep.subr.mxu0 0.0
    %1760 = vmatpush2.msra.mxu0 %v1726
    %1761 = vmatprep.subr.mxu0 0.0
    %1762 = vmatpush2.msra.mxu0 %v1725
    %1763 = vmatprep.subr.mxu0 0.0
    %1764 = vmatpush2.msra.mxu0 %v1724
    %1765 = vmatprep.subr.mxu0 0.0
    %1766 = vmatpush2.msra.mxu0 %v1723
    %1767 = vmatprep.subr.mxu0 0.0
    %1768 = vmatpush2.msra.mxu0 %v1722
    %1769 = vmatprep.subr.mxu0 0.0
    %1770 = vmatpush2.msra.mxu0 %v1721
    %1771 = vmatprep.subr.mxu0 0.0
    %1772 = vmatpush2.msra.mxu0 %v1720
    %1773 = vmatprep.subr.mxu0 0.0
    %1774 = vmatpush2.msra.mxu0 %v1719
    %1775 = vmatprep.subr.mxu0 0.0
    %1776 = vmatpush2.msra.mxu0 %v1718
    %1777 = vmatprep.subr.mxu0 0.0
    %1778 = vmatpush2.msra.mxu0 %v1717
    %1779 = vmatprep.subr.mxu0 0.0
    %1780 = vmatpush2.msra.mxu0 %v1716
    %1781 = vmatprep.subr.mxu0 0.0
    %1782 = vmatpush2.msra.mxu0 %v1715
    %1783 = vmatprep.subr.mxu0 0.0
    %1784 = vmatpush2.msra.mxu0 %v1714
    %1785 = vmatprep.subr.mxu0 0.0
    %1786 = vmatpush2.msra.mxu0 %v1713
    %1787 = vmatprep.subr.mxu0 0.0
    %1788 = vmatpush2.msra.mxu0 %v1712
    %1789 = vmatprep.subr.mxu0 0.0
    %1790 = vmatpush2.msra.mxu0 %v1711
    %1791 = vmatprep.mubr.f32.mxu0 %v1693
    %1792 = vmatmul.mubr.f32.gmra.mxu0 %v1692
    %v1793 = vpop.f32.mrf.mxu0
    %v1794 = vadd.f32 0.0, %v1793
    %v1795 = vpop.f32.mrf.mxu0
    %1796 = vdwg.mxu0
    %v1797 = vadd.f32 %v1607, %v1794
    %s1798 = scalar_lea.vmem [#allocation2], 144
    %v1799 = vld [vmem:[%s1798] sm:$0xff]
    %v1800 = vld [vmem:[%s1798 + $0x8] sm:$0xff]
    %v1801 = vld [vmem:[%s1798 + $0xa0] sm:$0xff]
    %v1802 = vld [vmem:[%s1798 + $0xa8] sm:$0xff]
    %v1803 = vld [vmem:[%s1798 + $0x140] sm:$0xff]
    %v1804 = vld [vmem:[%s1798 + $0x148] sm:$0xff]
    %v1805 = vld [vmem:[%s1798 + $0x1e0] sm:$0xff]
    %v1806 = vld [vmem:[%s1798 + $0x1e8] sm:$0xff]
    %v1807 = vld [vmem:[%s1798 + $0x280] sm:$0xff]
    %v1808 = vld [vmem:[%s1798 + $0x288] sm:$0xff]
    %v1809 = vld [vmem:[%s1798 + $0x320] sm:$0xff]
    %v1810 = vld [vmem:[%s1798 + $0x328] sm:$0xff]
    %1811 = vmatprep.subr.mxu0 0.0
    %1812 = vmatpush1.msra.mxu0 0.0
    %1813 = vmatprep.subr.mxu0 0.0
    %1814 = vmatpush1.msra.mxu0 0.0
    %1815 = vmatprep.subr.mxu0 0.0
    %1816 = vmatpush1.msra.mxu0 0.0
    %1817 = vmatprep.subr.mxu0 0.0
    %1818 = vmatpush1.msra.mxu0 0.0
    %1819 = vmatprep.subr.mxu0 0.0
    %1820 = vmatpush1.msra.mxu0 0.0
    %1821 = vmatprep.subr.mxu0 0.0
    %1822 = vmatpush1.msra.mxu0 0.0
    %1823 = vmatprep.subr.mxu0 0.0
    %1824 = vmatpush1.msra.mxu0 0.0
    %1825 = vmatprep.subr.mxu0 0.0
    %1826 = vmatpush1.msra.mxu0 0.0
    %1827 = vmatprep.subr.mxu0 0.0
    %1828 = vmatpush1.msra.mxu0 0.0
    %1829 = vmatprep.subr.mxu0 0.0
    %1830 = vmatpush1.msra.mxu0 0.0
    %1831 = vmatprep.subr.mxu0 %v1810
    %1832 = vmatpush1.msra.mxu0 %v1809
    %1833 = vmatprep.subr.mxu0 %v1808
    %1834 = vmatpush1.msra.mxu0 %v1807
    %1835 = vmatprep.subr.mxu0 %v1806
    %1836 = vmatpush1.msra.mxu0 %v1805
    %1837 = vmatprep.subr.mxu0 %v1804
    %1838 = vmatpush1.msra.mxu0 %v1803
    %1839 = vmatprep.subr.mxu0 %v1802
    %1840 = vmatpush1.msra.mxu0 %v1801
    %1841 = vmatprep.subr.mxu0 %v1800
    %1842 = vmatpush1.msra.mxu0 %v1799
    %1843 = vmatprep.subr.mxu0 0.0
    %1844 = vmatpush2.msra.mxu0 0.0
    %1845 = vmatprep.subr.mxu0 0.0
    %1846 = vmatpush2.msra.mxu0 0.0
    %1847 = vmatprep.subr.mxu0 0.0
    %1848 = vmatpush2.msra.mxu0 0.0
    %1849 = vmatprep.subr.mxu0 0.0
    %1850 = vmatpush2.msra.mxu0 0.0
    %1851 = vmatprep.subr.mxu0 0.0
    %1852 = vmatpush2.msra.mxu0 0.0
    %1853 = vmatprep.subr.mxu0 0.0
    %1854 = vmatpush2.msra.mxu0 0.0
    %1855 = vmatprep.subr.mxu0 0.0
    %1856 = vmatpush2.msra.mxu0 0.0
    %1857 = vmatprep.subr.mxu0 0.0
    %1858 = vmatpush2.msra.mxu0 0.0
    %1859 = vmatprep.subr.mxu0 0.0
    %1860 = vmatpush2.msra.mxu0 0.0
    %1861 = vmatprep.subr.mxu0 0.0
    %1862 = vmatpush2.msra.mxu0 0.0
    %1863 = vmatprep.subr.mxu0 0.0
    %1864 = vmatpush2.msra.mxu0 0.0
    %1865 = vmatprep.subr.mxu0 0.0
    %1866 = vmatpush2.msra.mxu0 0.0
    %1867 = vmatprep.subr.mxu0 0.0
    %1868 = vmatpush2.msra.mxu0 0.0
    %1869 = vmatprep.subr.mxu0 0.0
    %1870 = vmatpush2.msra.mxu0 0.0
    %1871 = vmatprep.subr.mxu0 0.0
    %1872 = vmatpush2.msra.mxu0 0.0
    %1873 = vmatprep.subr.mxu0 0.0
    %1874 = vmatpush2.msra.mxu0 0.0
    %1875 = vmatprep.mubr.f32.mxu0 0.0
    %1876 = vmatmul.mubr.f32.gmra.mxu0 %v102
    %v1877 = vpop.f32.mrf.mxu0
    %v1878 = vadd.f32 0.0, %v1877
    %v1879 = vpop.f32.mrf.mxu0
    %v1880 = vadd.f32 0.0, %v1879
    %1881 = vdwg.mxu0
    %v1882 = vmax.f32 %v1878, 0.0
    %v1883 = vmax.f32 %v1880, 0.0
    %s1884 = scalar_lea.vmem [#allocation4], 2304
    %v1885 = vld [vmem:[%s1884] sm:$0xff]
    %v1886 = vld [vmem:[%s1884 + $0x8] sm:$0xff]
    %v1887 = vld [vmem:[%s1884 + $0x10] sm:$0xff]
    %v1888 = vld [vmem:[%s1884 + $0x18] sm:$0xff]
    %v1889 = vld [vmem:[%s1884 + $0x20] sm:$0xff]
    %v1890 = vld [vmem:[%s1884 + $0x28] sm:$0xff]
    %v1891 = vld [vmem:[%s1884 + $0x30] sm:$0xff]
    %v1892 = vld [vmem:[%s1884 + $0x38] sm:$0xff]
    %v1893 = vld [vmem:[%s1884 + $0x40] sm:$0xff]
    %v1894 = vld [vmem:[%s1884 + $0x48] sm:$0xff]
    %v1895 = vld [vmem:[%s1884 + $0x50] sm:$0xff]
    %v1896 = vld [vmem:[%s1884 + $0x58] sm:$0xff]
    %v1897 = vld [vmem:[%s1884 + $0x60] sm:$0xff]
    %v1898 = vld [vmem:[%s1884 + $0x68] sm:$0xff]
    %v1899 = vld [vmem:[%s1884 + $0x70] sm:$0xff]
    %v1900 = vld [vmem:[%s1884 + $0x78] sm:$0xff]
    %v1901 = vld [vmem:[%s1884 + $0x80] sm:$0xff]
    %v1902 = vld [vmem:[%s1884 + $0x88] sm:$0xff]
    %v1903 = vld [vmem:[%s1884 + $0x90] sm:$0xff]
    %v1904 = vld [vmem:[%s1884 + $0x98] sm:$0xff]
    %v1905 = vld [vmem:[%s1884 + $0xa0] sm:$0xff]
    %v1906 = vld [vmem:[%s1884 + $0xa8] sm:$0xff]
    %v1907 = vld [vmem:[%s1884 + $0xb0] sm:$0xff]
    %v1908 = vld [vmem:[%s1884 + $0xb8] sm:$0xff]
    %v1909 = vld [vmem:[%s1884 + $0xc0] sm:$0xff]
    %v1910 = vld [vmem:[%s1884 + $0xc8] sm:$0xff]
    %v1911 = vld [vmem:[%s1884 + $0xd0] sm:$0xff]
    %v1912 = vld [vmem:[%s1884 + $0xd8] sm:$0xff]
    %v1913 = vld [vmem:[%s1884 + $0xe0] sm:$0xff]
    %v1914 = vld [vmem:[%s1884 + $0xe8] sm:$0xff]
    %v1915 = vld [vmem:[%s1884 + $0xf0] sm:$0xff]
    %v1916 = vld [vmem:[%s1884 + $0xf8] sm:$0xff]
    %1917 = vmatprep.subr.mxu0 0.0
    %1918 = vmatpush1.msra.mxu0 %v1900
    %1919 = vmatprep.subr.mxu0 0.0
    %1920 = vmatpush1.msra.mxu0 %v1899
    %1921 = vmatprep.subr.mxu0 0.0
    %1922 = vmatpush1.msra.mxu0 %v1898
    %1923 = vmatprep.subr.mxu0 0.0
    %1924 = vmatpush1.msra.mxu0 %v1897
    %1925 = vmatprep.subr.mxu0 0.0
    %1926 = vmatpush1.msra.mxu0 %v1896
    %1927 = vmatprep.subr.mxu0 0.0
    %1928 = vmatpush1.msra.mxu0 %v1895
    %1929 = vmatprep.subr.mxu0 0.0
    %1930 = vmatpush1.msra.mxu0 %v1894
    %1931 = vmatprep.subr.mxu0 0.0
    %1932 = vmatpush1.msra.mxu0 %v1893
    %1933 = vmatprep.subr.mxu0 0.0
    %1934 = vmatpush1.msra.mxu0 %v1892
    %1935 = vmatprep.subr.mxu0 0.0
    %1936 = vmatpush1.msra.mxu0 %v1891
    %1937 = vmatprep.subr.mxu0 0.0
    %1938 = vmatpush1.msra.mxu0 %v1890
    %1939 = vmatprep.subr.mxu0 0.0
    %1940 = vmatpush1.msra.mxu0 %v1889
    %1941 = vmatprep.subr.mxu0 0.0
    %1942 = vmatpush1.msra.mxu0 %v1888
    %1943 = vmatprep.subr.mxu0 0.0
    %1944 = vmatpush1.msra.mxu0 %v1887
    %1945 = vmatprep.subr.mxu0 0.0
    %1946 = vmatpush1.msra.mxu0 %v1886
    %1947 = vmatprep.subr.mxu0 0.0
    %1948 = vmatpush1.msra.mxu0 %v1885
    %1949 = vmatprep.subr.mxu0 0.0
    %1950 = vmatpush2.msra.mxu0 %v1916
    %1951 = vmatprep.subr.mxu0 0.0
    %1952 = vmatpush2.msra.mxu0 %v1915
    %1953 = vmatprep.subr.mxu0 0.0
    %1954 = vmatpush2.msra.mxu0 %v1914
    %1955 = vmatprep.subr.mxu0 0.0
    %1956 = vmatpush2.msra.mxu0 %v1913
    %1957 = vmatprep.subr.mxu0 0.0
    %1958 = vmatpush2.msra.mxu0 %v1912
    %1959 = vmatprep.subr.mxu0 0.0
    %1960 = vmatpush2.msra.mxu0 %v1911
    %1961 = vmatprep.subr.mxu0 0.0
    %1962 = vmatpush2.msra.mxu0 %v1910
    %1963 = vmatprep.subr.mxu0 0.0
    %1964 = vmatpush2.msra.mxu0 %v1909
    %1965 = vmatprep.subr.mxu0 0.0
    %1966 = vmatpush2.msra.mxu0 %v1908
    %1967 = vmatprep.subr.mxu0 0.0
    %1968 = vmatpush2.msra.mxu0 %v1907
    %1969 = vmatprep.subr.mxu0 0.0
    %1970 = vmatpush2.msra.mxu0 %v1906
    %1971 = vmatprep.subr.mxu0 0.0
    %1972 = vmatpush2.msra.mxu0 %v1905
    %1973 = vmatprep.subr.mxu0 0.0
    %1974 = vmatpush2.msra.mxu0 %v1904
    %1975 = vmatprep.subr.mxu0 0.0
    %1976 = vmatpush2.msra.mxu0 %v1903
    %1977 = vmatprep.subr.mxu0 0.0
    %1978 = vmatpush2.msra.mxu0 %v1902
    %1979 = vmatprep.subr.mxu0 0.0
    %1980 = vmatpush2.msra.mxu0 %v1901
    %1981 = vmatprep.mubr.f32.mxu0 %v1883
    %1982 = vmatmul.mubr.f32.gmra.mxu0 %v1882
    %v1983 = vpop.f32.mrf.mxu0
    %v1984 = vadd.f32 0.0, %v1983
    %v1985 = vpop.f32.mrf.mxu0
    %1986 = vdwg.mxu0
    %v1987 = vadd.f32 %v1797, %v1984
    %v1988 = vld [vmem:[#allocation6] sm:$0x1]
    %v1990 = vlaneseq
    %v1991 = vshrl.u32 %v1990, 7
    %v1992 = vsub.s32 0, %v1991
    %v1993 = vrot.slane %v1988, %v1992
    %v1995 = vadd.f32 %v1987, %v1993
    %v1996 = vmax.f32 %v1995, 0.0
    %v1997 = vld [vmem:[#allocation7] sm:$0xff]
    %v1998 = vld [vmem:[#allocation7 + $0x8] sm:$0xff]
    %v1999 = vld [vmem:[#allocation7 + $0x10] sm:$0xff]
    %v2000 = vld [vmem:[#allocation7 + $0x18] sm:$0xff]
    %v2001 = vld [vmem:[#allocation7 + $0x20] sm:$0xff]
    %v2002 = vld [vmem:[#allocation7 + $0x28] sm:$0xff]
    %v2003 = vld [vmem:[#allocation7 + $0x30] sm:$0xff]
    %v2004 = vld [vmem:[#allocation7 + $0x38] sm:$0xff]
    %v2005 = vld [vmem:[#allocation7 + $0x40] sm:$0xff]
    %v2006 = vld [vmem:[#allocation7 + $0x48] sm:$0xff]
    %v2007 = vld [vmem:[#allocation7 + $0x50] sm:$0xff]
    %v2008 = vld [vmem:[#allocation7 + $0x58] sm:$0xff]
    %v2009 = vld [vmem:[#allocation7 + $0x60] sm:$0xff]
    %v2010 = vld [vmem:[#allocation7 + $0x68] sm:$0xff]
    %v2011 = vld [vmem:[#allocation7 + $0x70] sm:$0xff]
    %v2012 = vld [vmem:[#allocation7 + $0x78] sm:$0xff]
    %v2013 = vld [vmem:[#allocation9] sm:$0x1]
    %v2015 = vlaneseq
    %v2016 = vshrl.u32 %v2015, 7
    %v2017 = vsub.s32 0, %v2016
    %v2018 = vrot.slane %v2013, %v2017
    %2020 = vmatprep.subr.mxu0 0.0
    %2021 = vmatpush1.msra.mxu0 %v2012
    %2022 = vmatprep.subr.mxu0 0.0
    %2023 = vmatpush1.msra.mxu0 %v2011
    %2024 = vmatprep.subr.mxu0 0.0
    %2025 = vmatpush1.msra.mxu0 %v2010
    %2026 = vmatprep.subr.mxu0 0.0
    %2027 = vmatpush1.msra.mxu0 %v2009
    %2028 = vmatprep.subr.mxu0 0.0
    %2029 = vmatpush1.msra.mxu0 %v2008
    %2030 = vmatprep.subr.mxu0 0.0
    %2031 = vmatpush1.msra.mxu0 %v2007
    %2032 = vmatprep.subr.mxu0 0.0
    %2033 = vmatpush1.msra.mxu0 %v2006
    %2034 = vmatprep.subr.mxu0 0.0
    %2035 = vmatpush1.msra.mxu0 %v2005
    %2036 = vmatprep.subr.mxu0 0.0
    %2037 = vmatpush1.msra.mxu0 %v2004
    %2038 = vmatprep.subr.mxu0 0.0
    %2039 = vmatpush1.msra.mxu0 %v2003
    %2040 = vmatprep.subr.mxu0 0.0
    %2041 = vmatpush1.msra.mxu0 %v2002
    %2042 = vmatprep.subr.mxu0 0.0
    %2043 = vmatpush1.msra.mxu0 %v2001
    %2044 = vmatprep.subr.mxu0 0.0
    %2045 = vmatpush1.msra.mxu0 %v2000
    %2046 = vmatprep.subr.mxu0 0.0
    %2047 = vmatpush1.msra.mxu0 %v1999
    %2048 = vmatprep.subr.mxu0 0.0
    %2049 = vmatpush1.msra.mxu0 %v1998
    %2050 = vmatprep.subr.mxu0 0.0
    %2051 = vmatpush1.msra.mxu0 %v1997
    %2052 = vmatprep.subr.mxu0 0.0
    %2053 = vmatpush2.msra.mxu0 0.0
    %2054 = vmatprep.subr.mxu0 0.0
    %2055 = vmatpush2.msra.mxu0 0.0
    %2056 = vmatprep.subr.mxu0 0.0
    %2057 = vmatpush2.msra.mxu0 0.0
    %2058 = vmatprep.subr.mxu0 0.0
    %2059 = vmatpush2.msra.mxu0 0.0
    %2060 = vmatprep.subr.mxu0 0.0
    %2061 = vmatpush2.msra.mxu0 0.0
    %2062 = vmatprep.subr.mxu0 0.0
    %2063 = vmatpush2.msra.mxu0 0.0
    %2064 = vmatprep.subr.mxu0 0.0
    %2065 = vmatpush2.msra.mxu0 0.0
    %2066 = vmatprep.subr.mxu0 0.0
    %2067 = vmatpush2.msra.mxu0 0.0
    %2068 = vmatprep.subr.mxu0 0.0
    %2069 = vmatpush2.msra.mxu0 0.0
    %2070 = vmatprep.subr.mxu0 0.0
    %2071 = vmatpush2.msra.mxu0 0.0
    %2072 = vmatprep.subr.mxu0 0.0
    %2073 = vmatpush2.msra.mxu0 0.0
    %2074 = vmatprep.subr.mxu0 0.0
    %2075 = vmatpush2.msra.mxu0 0.0
    %2076 = vmatprep.subr.mxu0 0.0
    %2077 = vmatpush2.msra.mxu0 0.0
    %2078 = vmatprep.subr.mxu0 0.0
    %2079 = vmatpush2.msra.mxu0 0.0
    %2080 = vmatprep.subr.mxu0 0.0
    %2081 = vmatpush2.msra.mxu0 0.0
    %2082 = vmatprep.subr.mxu0 0.0
    %2083 = vmatpush2.msra.mxu0 0.0
    %2084 = vmatprep.mubr.f32.mxu0 0.0
    %2085 = vmatmul.mubr.f32.gmra.mxu0 %v1996
    %v2086 = vpop.f32.mrf.mxu0
    %v2087 = vadd.f32 %v2018, %v2086
    %v2088 = vpop.f32.mrf.mxu0
    %2089 = vdwg.mxu0
    %2090 = vst [vmem:[%s6] sm:$0xff] %v2087
    // Predicated region
    $region46: #{cnn1d_forward.1} parent=1 // pred_check
      _
    $region47: #{cnn1d_forward.1} parent=1 // pred_check_branch
      %2092 = sbr.rel (0) target = $region49
    $region48: #{cnn1d_forward.1} parent=1 // pred_region
      _
    $region49: #{cnn1d_forward.1} parent=1 // pred_fallthru
      _
    // Predicated region
    $region50: #{cnn1d_forward.1} parent=1 // pred_check
      _
    $region51: #{cnn1d_forward.1} parent=1 // pred_check_branch
      %2094 = sbr.rel (0) target = $region53
    $region52: #{cnn1d_forward.1} parent=1 // pred_region
      _
    $region53: #{cnn1d_forward.1} parent=1 // pred_fallthru
      _
    %2095 = vsyncpa [#allocation3], 1
    %2096 = vsyncpa [#allocation5], 1
    %2097 = vsyncpa [#allocation8], 1

</llo_original>
